<compile_context>
chip_gen: v6e
topology: v6e:2x2x1
jax: 0.10.0
libtpu: 0.0.40
codegen_flags: <defaults>
</compile_context>

<pallas_src>
import functools

import jax
import jax.numpy as jnp
import numpy as np
from jax.experimental import pallas as pl
from jax.experimental.pallas import tpu as pltpu


# -----------------------------------------------------------------------------
# Pallas kernel: embedding gather + skewed/fused 2-layer LSTM, single invocation.
# -----------------------------------------------------------------------------
def _encoder_kernel(idx_ref,                         # (B, S)   int32 token indices
                    emb_ref,                         # (V, E)   embedding table
                    wih0_ref, whh0_ref, b0_ref,      # (E,4H) (H,4H) (1,4H)  layer 0
                    wih1_ref, whh1_ref, b1_ref,      # (H,4H) (H,4H) (1,4H)  layer 1
                    out_ref,                         # (B, S*H) top-layer outputs
                    hn_ref, cn_ref,                  # (2, B, H) final hidden / cell
                    *, seq_len, batch, hidden_size, vocab_size):
    S, B, H, V = seq_len, batch, hidden_size, vocab_size
    f32 = jnp.float32

    # ---------------- one-time setup (off the recurrence critical path) -------------
    whh0 = whh0_ref[...]
    wih1 = wih1_ref[...]
    whh1 = whh1_ref[...]
    b0 = b0_ref[...]
    b1 = b1_ref[...]

    def interleave(a, b):
        # (R,4H),(R,4H) -> (R,8H) with gate-type-grouped blocks [a_i,b_i,a_f,b_f,a_g,b_g,a_o,b_o]
        parts = []
        for x in range(4):
            parts.append(a[:, x * H:(x + 1) * H])
            parts.append(b[:, x * H:(x + 1) * H])
        return jnp.concatenate(parts, axis=1)

    # Fused recurrent weight: [h0_{s-1} | h1_{s-2}] @ w_rec -> gates for both layers.
    # Even blocks = layer-0 gates, odd blocks = layer-1 gates (each H wide).
    w_rec = jnp.concatenate(
        [interleave(whh0, wih1),                         # rows driven by h0_{s-1}
         interleave(jnp.zeros_like(whh1), whh1)],        # rows driven by h1_{s-2}
        axis=0)                                          # (2H, 8H)

    bias8 = interleave(b0, b1)                           # (1, 8H)

    # Embedding gather as an exact one-hot matmul, fused with the layer-0 input
    # projection:  xadd[s*B+b] = emb[idx[b,s]] @ Wih0 (+ b0) in the interleaved layout.
    idx = idx_ref[...]                                   # (B, S) int32
    iota_v = jax.lax.broadcasted_iota(jnp.int32, (B, V), 1)
    onehot = jnp.concatenate(
        [(idx[:, t:t + 1] == iota_v).astype(f32) for t in range(S)], axis=0)   # (S*B, V)
    proj = jnp.dot(emb_ref[...], wih0_ref[...], preferred_element_type=f32)    # (V, 4H)
    proj8 = interleave(proj, jnp.zeros_like(proj))                             # (V, 8H)
    xadd = jnp.dot(onehot, proj8, preferred_element_type=f32) + bias8          # (S*B, 8H)

    left = jax.lax.broadcasted_iota(jnp.int32, (B, 2 * H), 1) < H   # layer-0 lane mask

    # ---------------- skewed recurrence: one fused MXU matmul per combined step -----
    # Packed state entering step s:  hcat = [h0_{s-1} | h1_{s-2}], same for ccat.
    hcat = jnp.zeros((B, 2 * H), f32)
    ccat = jnp.zeros((B, 2 * H), f32)
    h0_fin = c0_fin = None

    for s in range(S + 1):   # static unroll (S is small); use fori_loop for long S
        g = jnp.dot(hcat, w_rec, preferred_element_type=f32)        # (B, 8H)
        g = g + (xadd[s * B:(s + 1) * B, :] if s < S else bias8)

        sg = jax.nn.sigmoid(g)                                       # full-vreg EUP
        tg = jnp.tanh(g)
        i = sg[:, 0:2 * H]
        f = sg[:, 2 * H:4 * H]
        gg = tg[:, 4 * H:6 * H]
        o = sg[:, 6 * H:8 * H]

        ccat_n = f * ccat + i * gg                                   # (B, 2H) packed
        hcat_n = o * jnp.tanh(ccat_n)

        if s == 0:
            # Layer 1 has not started yet: its half of the packed state must stay 0.
            hcat_n = jnp.where(left, hcat_n, 0.0)
            ccat_n = jnp.where(left, ccat_n, 0.0)

        if s >= 1:
            # layer-1 output for timestep s-1 -> lane-dense store, idle vst slot
            out_ref[:, (s - 1) * H:s * H] = hcat_n[:, H:2 * H].astype(out_ref.dtype)

        if s == S - 1:
            # states entering the epilogue step are the final layer-0 states
            h0_fin = hcat_n[:, 0:H]
            c0_fin = ccat_n[:, 0:H]

        hcat, ccat = hcat_n, ccat_n

    hn_ref[0] = h0_fin.astype(hn_ref.dtype)
    hn_ref[1] = hcat[:, H:2 * H].astype(hn_ref.dtype)
    cn_ref[0] = c0_fin.astype(cn_ref.dtype)
    cn_ref[1] = ccat[:, H:2 * H].astype(cn_ref.dtype)


# -----------------------------------------------------------------------------
# Wrapper reproducing EncoderModel.forward — a single pallas_call, no relayout glue.
# -----------------------------------------------------------------------------
def encoder_forward(indices, params, hidden_size):
    B, S = indices.shape
    V, E = params["embedding"].shape
    H = hidden_size
    dt = jnp.float32

    kernel = functools.partial(_encoder_kernel, seq_len=S, batch=B,
                               hidden_size=H, vocab_size=V)

    out2d, h_n, c_n = pl.pallas_call(
        kernel,
        out_shape=(
            jax.ShapeDtypeStruct((B, S * H), dt),
            jax.ShapeDtypeStruct((2, B, H), dt),
            jax.ShapeDtypeStruct((2, B, H), dt),
        ),
        grid_spec=pltpu.PrefetchScalarGridSpec(
            num_scalar_prefetch=0,
            grid=(1,),                                           # whole problem resident
            in_specs=[
                pl.BlockSpec((B, S), lambda i: (0, 0)),          # indices
                pl.BlockSpec((V, E), lambda i: (0, 0)),          # embedding table
                pl.BlockSpec((E, 4 * H), lambda i: (0, 0)),      # W_ih^T layer 0
                pl.BlockSpec((H, 4 * H), lambda i: (0, 0)),      # W_hh^T layer 0
                pl.BlockSpec((1, 4 * H), lambda i: (0, 0)),      # bias   layer 0
                pl.BlockSpec((H, 4 * H), lambda i: (0, 0)),      # W_ih^T layer 1
                pl.BlockSpec((H, 4 * H), lambda i: (0, 0)),      # W_hh^T layer 1
                pl.BlockSpec((1, 4 * H), lambda i: (0, 0)),      # bias   layer 1
            ],
            out_specs=[
                pl.BlockSpec((B, S * H), lambda i: (0, 0)),      # encoder_output (flat)
                pl.BlockSpec((2, B, H), lambda i: (0, 0, 0)),    # h_n
                pl.BlockSpec((2, B, H), lambda i: (0, 0, 0)),    # c_n
            ],
        ),
        compiler_params=pltpu.CompilerParams(
            dimension_semantics=("arbitrary",)),
    )(indices.astype(jnp.int32), params["embedding"],
      params["wih0_t"], params["whh0_t"], params["b0"],
      params["wih1_t"], params["whh1_t"], params["b1"])

    # Contiguous reshape (row-major) -> bitcast, no data movement.
    encoder_output = out2d.reshape(B, S, H)                      # (B, S, H) batch_first
    return encoder_output, (h_n, c_n)


# -----------------------------------------------------------------------------
# Pure-JAX reference (same math as torch.nn.LSTM) for correctness check
# -----------------------------------------------------------------------------
def ref_forward(indices, params, hidden_size):
    emb = params["embedding"][indices]
    B, S, _ = emb.shape
    H = hidden_size

    def run_layer(x_seq, wih_t, whh_t, b):
        h = jnp.zeros((B, H), jnp.float32)
        c = jnp.zeros((B, H), jnp.float32)
        outs = []
        for t in range(S):
            g = x_seq[:, t] @ wih_t + h @ whh_t + b
            i = jax.nn.sigmoid(g[:, :H])
            f = jax.nn.sigmoid(g[:, H:2 * H])
            gg = jnp.tanh(g[:, 2 * H:3 * H])
            o = jax.nn.sigmoid(g[:, 3 * H:])
            c = f * c + i * gg
            h = o * jnp.tanh(c)
            outs.append(h)
        return jnp.stack(outs, axis=1), h, c

    y0, h0, c0 = run_layer(emb, params["wih0_t"], params["whh0_t"], params["b0"])
    y1, h1, c1 = run_layer(y0, params["wih1_t"], params["whh1_t"], params["b1"])
    return y1, (jnp.stack([h0, h1]), jnp.stack([c0, c1]))


# -----------------------------------------------------------------------------
# Deterministic parameter init (shapes from EncoderModel.__init__)
# -----------------------------------------------------------------------------
def init_params(key, input_size, emb_size, hidden_size):
    H, E = hidden_size, emb_size
    k = 1.0 / np.sqrt(H)
    ks = jax.random.split(key, 9)
    u = lambda kk, shape: jax.random.uniform(kk, shape, jnp.float32, -k, k)
    return {
        # nn.Embedding(input_size, emb_size): weight (num_embeddings, embedding_dim)
        "embedding": jax.random.normal(ks[0], (input_size, E), jnp.float32),
        # layer 0: W_ih (4H,E), W_hh (4H,H), b_ih+b_hh (4H,) -- stored transposed
        "wih0_t": u(ks[1], (E, 4 * H)),
        "whh0_t": u(ks[2], (H, 4 * H)),
        "b0": (u(ks[3], (1, 4 * H)) + u(ks[4], (1, 4 * H))),
        # layer 1: W_ih (4H,H), W_hh (4H,H)
        "wih1_t": u(ks[5], (H, 4 * H)),
        "whh1_t": u(ks[6], (H, 4 * H)),
        "b1": (u(ks[7], (1, 4 * H)) + u(ks[8], (1, 4 * H))),
    }


if __name__ == "__main__":
    input_size = 16      # num_embeddings (== self.sequence_length, unused in forward)
    emb_size = 16
    hidden_size = 32
    output_size = 8      # unused by EncoderModel.forward
    batch, seq = 2, 8

    key = jax.random.PRNGKey(0)
    pkey, ikey = jax.random.split(key)
    params = init_params(pkey, input_size, emb_size, hidden_size)
    indices = jax.random.randint(ikey, (batch, seq), 0, input_size, dtype=jnp.int32)

    fwd = jax.jit(functools.partial(encoder_forward, hidden_size=hidden_size))
    enc_out, (h_n, c_n) = fwd(indices, params)
    jax.block_until_ready((enc_out, h_n, c_n))

    ref_out, (ref_h, ref_c) = ref_forward(indices, params, hidden_size)

    assert enc_out.shape == (batch, seq, hidden_size)
    assert h_n.shape == (2, batch, hidden_size) and c_n.shape == (2, batch, hidden_size)
    np.testing.assert_allclose(np.asarray(enc_out), np.asarray(ref_out), rtol=1e-4, atol=1e-5)
    np.testing.assert_allclose(np.asarray(h_n), np.asarray(ref_h), rtol=1e-4, atol=1e-5)
    np.testing.assert_allclose(np.asarray(c_n), np.asarray(ref_c), rtol=1e-4, atol=1e-5)

    print("KERNEL_OK")
</pallas_src>

<mosaic_0001>
module attributes {stable_mosaic.version = 11 : i64} {
  func.func @_encoder_kernel(%arg0: i32, %arg1: memref<2x8xi32, #tpu.memory_space<vmem>>, %arg2: memref<16x16xf32, #tpu.memory_space<vmem>>, %arg3: memref<16x128xf32, #tpu.memory_space<vmem>>, %arg4: memref<32x128xf32, #tpu.memory_space<vmem>>, %arg5: memref<1x128xf32, #tpu.memory_space<vmem>>, %arg6: memref<32x128xf32, #tpu.memory_space<vmem>>, %arg7: memref<32x128xf32, #tpu.memory_space<vmem>>, %arg8: memref<1x128xf32, #tpu.memory_space<vmem>>, %arg9: memref<2x256xf32, #tpu.memory_space<vmem>>, %arg10: memref<2x2x32xf32, #tpu.memory_space<vmem>>, %arg11: memref<2x2x32xf32, #tpu.memory_space<vmem>>) attributes {dimension_semantics = [#tpu.dimension_semantics<arbitrary>], iteration_bounds = array<i64: 1>, scalar_prefetch = 0 : i64, scratch_operands = 0 : i64, tpu.core_type = #tpu.core_type<tc>, window_params = [{pipeline_mode = #tpu.pipeline_mode<synchronous>, transform_indices = @transform_0, window_bounds = array<i64: 2, 8>}, {pipeline_mode = #tpu.pipeline_mode<synchronous>, transform_indices = @transform_1, window_bounds = array<i64: 16, 16>}, {pipeline_mode = #tpu.pipeline_mode<synchronous>, transform_indices = @transform_2, window_bounds = array<i64: 16, 128>}, {pipeline_mode = #tpu.pipeline_mode<synchronous>, transform_indices = @transform_3, window_bounds = array<i64: 32, 128>}, {pipeline_mode = #tpu.pipeline_mode<synchronous>, transform_indices = @transform_4, window_bounds = array<i64: 1, 128>}, {pipeline_mode = #tpu.pipeline_mode<synchronous>, transform_indices = @transform_5, window_bounds = array<i64: 32, 128>}, {pipeline_mode = #tpu.pipeline_mode<synchronous>, transform_indices = @transform_6, window_bounds = array<i64: 32, 128>}, {pipeline_mode = #tpu.pipeline_mode<synchronous>, transform_indices = @transform_7, window_bounds = array<i64: 1, 128>}, {pipeline_mode = #tpu.pipeline_mode<synchronous>, transform_indices = @transform_8, window_bounds = array<i64: 2, 256>}, {pipeline_mode = #tpu.pipeline_mode<synchronous>, transform_indices = @transform_9, window_bounds = array<i64: 2, 2, 32>}, {pipeline_mode = #tpu.pipeline_mode<synchronous>, transform_indices = @transform_10, window_bounds = array<i64: 2, 2, 32>}]} {
    %c0 = arith.constant 0 : index
    %c0_0 = arith.constant 0 : index
    %0 = vector.load %arg4[%c0, %c0_0] : memref<32x128xf32, #tpu.memory_space<vmem>>, vector<32x128xf32>
    %c0_1 = arith.constant 0 : index
    %c0_2 = arith.constant 0 : index
    %1 = vector.load %arg6[%c0_1, %c0_2] : memref<32x128xf32, #tpu.memory_space<vmem>>, vector<32x128xf32>
    %c0_3 = arith.constant 0 : index
    %c0_4 = arith.constant 0 : index
    %2 = vector.load %arg7[%c0_3, %c0_4] : memref<32x128xf32, #tpu.memory_space<vmem>>, vector<32x128xf32>
    %c0_5 = arith.constant 0 : index
    %c0_6 = arith.constant 0 : index
    %3 = vector.load %arg5[%c0_5, %c0_6] : memref<1x128xf32, #tpu.memory_space<vmem>>, vector<1x128xf32>
    %c0_7 = arith.constant 0 : index
    %c0_8 = arith.constant 0 : index
    %4 = vector.load %arg8[%c0_7, %c0_8] : memref<1x128xf32, #tpu.memory_space<vmem>>, vector<1x128xf32>
    %5 = vector.extract_strided_slice %0 {offsets = [0, 0], sizes = [32, 32], strides = [1, 1]} : vector<32x128xf32> to vector<32x32xf32>
    %6 = vector.extract_strided_slice %1 {offsets = [0, 0], sizes = [32, 32], strides = [1, 1]} : vector<32x128xf32> to vector<32x32xf32>
    %7 = vector.extract_strided_slice %0 {offsets = [0, 32], sizes = [32, 32], strides = [1, 1]} : vector<32x128xf32> to vector<32x32xf32>
    %8 = vector.extract_strided_slice %1 {offsets = [0, 32], sizes = [32, 32], strides = [1, 1]} : vector<32x128xf32> to vector<32x32xf32>
    %9 = vector.extract_strided_slice %0 {offsets = [0, 64], sizes = [32, 32], strides = [1, 1]} : vector<32x128xf32> to vector<32x32xf32>
    %10 = vector.extract_strided_slice %1 {offsets = [0, 64], sizes = [32, 32], strides = [1, 1]} : vector<32x128xf32> to vector<32x32xf32>
    %11 = vector.extract_strided_slice %0 {offsets = [0, 96], sizes = [32, 32], strides = [1, 1]} : vector<32x128xf32> to vector<32x32xf32>
    %12 = vector.extract_strided_slice %1 {offsets = [0, 96], sizes = [32, 32], strides = [1, 1]} : vector<32x128xf32> to vector<32x32xf32>
    %13 = tpu.concatenate %5, %6, %7, %8, %9, %10, %11, %12 in 1 : vector<32x32xf32>, vector<32x32xf32>, vector<32x32xf32>, vector<32x32xf32>, vector<32x32xf32>, vector<32x32xf32>, vector<32x32xf32>, vector<32x32xf32> -> vector<32x256xf32>
    %cst = arith.constant 0.000000e+00 : f32
    %14 = vector.broadcast %cst : f32 to vector<32x128xf32>
    %15 = vector.extract_strided_slice %14 {offsets = [0, 0], sizes = [32, 32], strides = [1, 1]} : vector<32x128xf32> to vector<32x32xf32>
    %16 = vector.extract_strided_slice %2 {offsets = [0, 0], sizes = [32, 32], strides = [1, 1]} : vector<32x128xf32> to vector<32x32xf32>
    %17 = vector.extract_strided_slice %14 {offsets = [0, 32], sizes = [32, 32], strides = [1, 1]} : vector<32x128xf32> to vector<32x32xf32>
    %18 = vector.extract_strided_slice %2 {offsets = [0, 32], sizes = [32, 32], strides = [1, 1]} : vector<32x128xf32> to vector<32x32xf32>
    %19 = vector.extract_strided_slice %14 {offsets = [0, 64], sizes = [32, 32], strides = [1, 1]} : vector<32x128xf32> to vector<32x32xf32>
    %20 = vector.extract_strided_slice %2 {offsets = [0, 64], sizes = [32, 32], strides = [1, 1]} : vector<32x128xf32> to vector<32x32xf32>
    %21 = vector.extract_strided_slice %14 {offsets = [0, 96], sizes = [32, 32], strides = [1, 1]} : vector<32x128xf32> to vector<32x32xf32>
    %22 = vector.extract_strided_slice %2 {offsets = [0, 96], sizes = [32, 32], strides = [1, 1]} : vector<32x128xf32> to vector<32x32xf32>
    %23 = tpu.concatenate %15, %16, %17, %18, %19, %20, %21, %22 in 1 : vector<32x32xf32>, vector<32x32xf32>, vector<32x32xf32>, vector<32x32xf32>, vector<32x32xf32>, vector<32x32xf32>, vector<32x32xf32>, vector<32x32xf32> -> vector<32x256xf32>
    %24 = tpu.concatenate %13, %23 in 0 : vector<32x256xf32>, vector<32x256xf32> -> vector<64x256xf32>
    %25 = vector.extract_strided_slice %3 {offsets = [0, 0], sizes = [1, 32], strides = [1, 1]} : vector<1x128xf32> to vector<1x32xf32>
    %26 = vector.extract_strided_slice %4 {offsets = [0, 0], sizes = [1, 32], strides = [1, 1]} : vector<1x128xf32> to vector<1x32xf32>
    %27 = vector.extract_strided_slice %3 {offsets = [0, 32], sizes = [1, 32], strides = [1, 1]} : vector<1x128xf32> to vector<1x32xf32>
    %28 = vector.extract_strided_slice %4 {offsets = [0, 32], sizes = [1, 32], strides = [1, 1]} : vector<1x128xf32> to vector<1x32xf32>
    %29 = vector.extract_strided_slice %3 {offsets = [0, 64], sizes = [1, 32], strides = [1, 1]} : vector<1x128xf32> to vector<1x32xf32>
    %30 = vector.extract_strided_slice %4 {offsets = [0, 64], sizes = [1, 32], strides = [1, 1]} : vector<1x128xf32> to vector<1x32xf32>
    %31 = vector.extract_strided_slice %3 {offsets = [0, 96], sizes = [1, 32], strides = [1, 1]} : vector<1x128xf32> to vector<1x32xf32>
    %32 = vector.extract_strided_slice %4 {offsets = [0, 96], sizes = [1, 32], strides = [1, 1]} : vector<1x128xf32> to vector<1x32xf32>
    %33 = tpu.concatenate %25, %26, %27, %28, %29, %30, %31, %32 in 1 : vector<1x32xf32>, vector<1x32xf32>, vector<1x32xf32>, vector<1x32xf32>, vector<1x32xf32>, vector<1x32xf32>, vector<1x32xf32>, vector<1x32xf32> -> vector<1x256xf32>
    %c0_9 = arith.constant 0 : index
    %c0_10 = arith.constant 0 : index
    %34 = vector.load %arg1[%c0_9, %c0_10] : memref<2x8xi32, #tpu.memory_space<vmem>>, vector<2x8xi32>
    %35 = tpu.iota {dimensions = array<i32: 1>} : vector<2x16xi32>
    %36 = vector.extract_strided_slice %34 {offsets = [0, 0], sizes = [2, 1], strides = [1, 1]} : vector<2x8xi32> to vector<2x1xi32>
    %37 = vector.broadcast %36 : vector<2x1xi32> to vector<2x16xi32>
    %38 = arith.cmpi eq, %37, %35 : vector<2x16xi32>
    %39 = arith.extui %38 : vector<2x16xi1> to vector<2x16xi32>
    %40 = arith.sitofp %39 : vector<2x16xi32> to vector<2x16xf32>
    %41 = vector.extract_strided_slice %34 {offsets = [0, 1], sizes = [2, 1], strides = [1, 1]} : vector<2x8xi32> to vector<2x1xi32>
    %42 = vector.broadcast %41 : vector<2x1xi32> to vector<2x16xi32>
    %43 = arith.cmpi eq, %42, %35 : vector<2x16xi32>
    %44 = arith.extui %43 : vector<2x16xi1> to vector<2x16xi32>
    %45 = arith.sitofp %44 : vector<2x16xi32> to vector<2x16xf32>
    %46 = vector.extract_strided_slice %34 {offsets = [0, 2], sizes = [2, 1], strides = [1, 1]} : vector<2x8xi32> to vector<2x1xi32>
    %47 = vector.broadcast %46 : vector<2x1xi32> to vector<2x16xi32>
    %48 = arith.cmpi eq, %47, %35 : vector<2x16xi32>
    %49 = arith.extui %48 : vector<2x16xi1> to vector<2x16xi32>
    %50 = arith.sitofp %49 : vector<2x16xi32> to vector<2x16xf32>
    %51 = vector.extract_strided_slice %34 {offsets = [0, 3], sizes = [2, 1], strides = [1, 1]} : vector<2x8xi32> to vector<2x1xi32>
    %52 = vector.broadcast %51 : vector<2x1xi32> to vector<2x16xi32>
    %53 = arith.cmpi eq, %52, %35 : vector<2x16xi32>
    %54 = arith.extui %53 : vector<2x16xi1> to vector<2x16xi32>
    %55 = arith.sitofp %54 : vector<2x16xi32> to vector<2x16xf32>
    %56 = vector.extract_strided_slice %34 {offsets = [0, 4], sizes = [2, 1], strides = [1, 1]} : vector<2x8xi32> to vector<2x1xi32>
    %57 = vector.broadcast %56 : vector<2x1xi32> to vector<2x16xi32>
    %58 = arith.cmpi eq, %57, %35 : vector<2x16xi32>
    %59 = arith.extui %58 : vector<2x16xi1> to vector<2x16xi32>
    %60 = arith.sitofp %59 : vector<2x16xi32> to vector<2x16xf32>
    %61 = vector.extract_strided_slice %34 {offsets = [0, 5], sizes = [2, 1], strides = [1, 1]} : vector<2x8xi32> to vector<2x1xi32>
    %62 = vector.broadcast %61 : vector<2x1xi32> to vector<2x16xi32>
    %63 = arith.cmpi eq, %62, %35 : vector<2x16xi32>
    %64 = arith.extui %63 : vector<2x16xi1> to vector<2x16xi32>
    %65 = arith.sitofp %64 : vector<2x16xi32> to vector<2x16xf32>
    %66 = vector.extract_strided_slice %34 {offsets = [0, 6], sizes = [2, 1], strides = [1, 1]} : vector<2x8xi32> to vector<2x1xi32>
    %67 = vector.broadcast %66 : vector<2x1xi32> to vector<2x16xi32>
    %68 = arith.cmpi eq, %67, %35 : vector<2x16xi32>
    %69 = arith.extui %68 : vector<2x16xi1> to vector<2x16xi32>
    %70 = arith.sitofp %69 : vector<2x16xi32> to vector<2x16xf32>
    %71 = vector.extract_strided_slice %34 {offsets = [0, 7], sizes = [2, 1], strides = [1, 1]} : vector<2x8xi32> to vector<2x1xi32>
    %72 = vector.broadcast %71 : vector<2x1xi32> to vector<2x16xi32>
    %73 = arith.cmpi eq, %72, %35 : vector<2x16xi32>
    %74 = arith.extui %73 : vector<2x16xi1> to vector<2x16xi32>
    %75 = arith.sitofp %74 : vector<2x16xi32> to vector<2x16xf32>
    %76 = tpu.concatenate %40, %45, %50, %55, %60, %65, %70, %75 in 0 : vector<2x16xf32>, vector<2x16xf32>, vector<2x16xf32>, vector<2x16xf32>, vector<2x16xf32>, vector<2x16xf32>, vector<2x16xf32>, vector<2x16xf32> -> vector<16x16xf32>
    %c0_11 = arith.constant 0 : index
    %c0_12 = arith.constant 0 : index
    %77 = vector.load %arg2[%c0_11, %c0_12] : memref<16x16xf32, #tpu.memory_space<vmem>>, vector<16x16xf32>
    %c0_13 = arith.constant 0 : index
    %c0_14 = arith.constant 0 : index
    %78 = vector.load %arg3[%c0_13, %c0_14] : memref<16x128xf32, #tpu.memory_space<vmem>>, vector<16x128xf32>
    %cst_15 = arith.constant dense<0.000000e+00> : vector<16x128xf32>
    %79 = tpu.matmul %77, %78, %cst_15 {dimension_numbers = #tpu.dot_dimension_numbers<[1], [0], [0], [1], [0, 0, 1, 1], [], []>} : vector<16x16xf32>, vector<16x128xf32>, vector<16x128xf32> -> vector<16x128xf32>
    %cst_16 = arith.constant 0.000000e+00 : f32
    %80 = vector.broadcast %cst_16 : f32 to vector<16x128xf32>
    %81 = vector.extract_strided_slice %79 {offsets = [0, 0], sizes = [16, 32], strides = [1, 1]} : vector<16x128xf32> to vector<16x32xf32>
    %82 = vector.extract_strided_slice %80 {offsets = [0, 0], sizes = [16, 32], strides = [1, 1]} : vector<16x128xf32> to vector<16x32xf32>
    %83 = vector.extract_strided_slice %79 {offsets = [0, 32], sizes = [16, 32], strides = [1, 1]} : vector<16x128xf32> to vector<16x32xf32>
    %84 = vector.extract_strided_slice %80 {offsets = [0, 32], sizes = [16, 32], strides = [1, 1]} : vector<16x128xf32> to vector<16x32xf32>
    %85 = vector.extract_strided_slice %79 {offsets = [0, 64], sizes = [16, 32], strides = [1, 1]} : vector<16x128xf32> to vector<16x32xf32>
    %86 = vector.extract_strided_slice %80 {offsets = [0, 64], sizes = [16, 32], strides = [1, 1]} : vector<16x128xf32> to vector<16x32xf32>
    %87 = vector.extract_strided_slice %79 {offsets = [0, 96], sizes = [16, 32], strides = [1, 1]} : vector<16x128xf32> to vector<16x32xf32>
    %88 = vector.extract_strided_slice %80 {offsets = [0, 96], sizes = [16, 32], strides = [1, 1]} : vector<16x128xf32> to vector<16x32xf32>
    %89 = tpu.concatenate %81, %82, %83, %84, %85, %86, %87, %88 in 1 : vector<16x32xf32>, vector<16x32xf32>, vector<16x32xf32>, vector<16x32xf32>, vector<16x32xf32>, vector<16x32xf32>, vector<16x32xf32>, vector<16x32xf32> -> vector<16x256xf32>
    %cst_17 = arith.constant dense<0.000000e+00> : vector<16x256xf32>
    %90 = tpu.matmul %76, %89, %cst_17 {dimension_numbers = #tpu.dot_dimension_numbers<[1], [0], [0], [1], [0, 0, 1, 1], [], []>} : vector<16x16xf32>, vector<16x256xf32>, vector<16x256xf32> -> vector<16x256xf32>
    %91 = vector.broadcast %33 : vector<1x256xf32> to vector<16x256xf32>
    %92 = arith.addf %90, %91 : vector<16x256xf32>
    %93 = tpu.iota {dimensions = array<i32: 1>} : vector<2x64xi32>
    %c32_i32 = arith.constant 32 : i32
    %94 = vector.broadcast %c32_i32 : i32 to vector<2x64xi32>
    %95 = arith.cmpi slt, %93, %94 : vector<2x64xi32>
    %cst_18 = arith.constant 0.000000e+00 : f32
    %96 = vector.broadcast %cst_18 : f32 to vector<2x64xf32>
    %cst_19 = arith.constant 0.000000e+00 : f32
    %97 = vector.broadcast %cst_19 : f32 to vector<2x64xf32>
    %cst_20 = arith.constant dense<0.000000e+00> : vector<2x256xf32>
    %98 = tpu.matmul %96, %24, %cst_20 {dimension_numbers = #tpu.dot_dimension_numbers<[1], [0], [0], [1], [0, 0, 1, 1], [], []>} : vector<2x64xf32>, vector<64x256xf32>, vector<2x256xf32> -> vector<2x256xf32>
    %99 = vector.extract_strided_slice %92 {offsets = [0, 0], sizes = [2, 256], strides = [1, 1]} : vector<16x256xf32> to vector<2x256xf32>
    %100 = arith.addf %98, %99 : vector<2x256xf32>
    %101 = arith.negf %100 : vector<2x256xf32>
    %102 = math.exp %101 : vector<2x256xf32>
    %cst_21 = arith.constant 1.000000e+00 : f32
    %103 = vector.broadcast %cst_21 : f32 to vector<2x256xf32>
    %104 = arith.addf %103, %102 : vector<2x256xf32>
    %105 = arith.divf %103, %104 : vector<2x256xf32>
    %106 = math.tanh %100 : vector<2x256xf32>
    %107 = vector.extract_strided_slice %105 {offsets = [0, 0], sizes = [2, 64], strides = [1, 1]} : vector<2x256xf32> to vector<2x64xf32>
    %108 = vector.extract_strided_slice %105 {offsets = [0, 64], sizes = [2, 64], strides = [1, 1]} : vector<2x256xf32> to vector<2x64xf32>
    %109 = vector.extract_strided_slice %106 {offsets = [0, 128], sizes = [2, 64], strides = [1, 1]} : vector<2x256xf32> to vector<2x64xf32>
    %110 = vector.extract_strided_slice %105 {offsets = [0, 192], sizes = [2, 64], strides = [1, 1]} : vector<2x256xf32> to vector<2x64xf32>
    %111 = arith.mulf %108, %97 : vector<2x64xf32>
    %112 = arith.mulf %107, %109 : vector<2x64xf32>
    %113 = arith.addf %111, %112 : vector<2x64xf32>
    %114 = math.tanh %113 : vector<2x64xf32>
    %115 = arith.mulf %110, %114 : vector<2x64xf32>
    %cst_22 = arith.constant 0.000000e+00 : f32
    %116 = vector.broadcast %cst_22 : f32 to vector<2x64xf32>
    %117 = arith.select %95, %115, %116 : vector<2x64xi1>, vector<2x64xf32>
    %cst_23 = arith.constant 0.000000e+00 : f32
    %118 = vector.broadcast %cst_23 : f32 to vector<2x64xf32>
    %119 = arith.select %95, %113, %118 : vector<2x64xi1>, vector<2x64xf32>
    %cst_24 = arith.constant dense<0.000000e+00> : vector<2x256xf32>
    %120 = tpu.matmul %117, %24, %cst_24 {dimension_numbers = #tpu.dot_dimension_numbers<[1], [0], [0], [1], [0, 0, 1, 1], [], []>} : vector<2x64xf32>, vector<64x256xf32>, vector<2x256xf32> -> vector<2x256xf32>
    %121 = vector.extract_strided_slice %92 {offsets = [2, 0], sizes = [2, 256], strides = [1, 1]} : vector<16x256xf32> to vector<2x256xf32>
    %122 = arith.addf %120, %121 : vector<2x256xf32>
    %123 = arith.negf %122 : vector<2x256xf32>
    %124 = math.exp %123 : vector<2x256xf32>
    %cst_25 = arith.constant 1.000000e+00 : f32
    %125 = vector.broadcast %cst_25 : f32 to vector<2x256xf32>
    %126 = arith.addf %125, %124 : vector<2x256xf32>
    %127 = arith.divf %125, %126 : vector<2x256xf32>
    %128 = math.tanh %122 : vector<2x256xf32>
    %129 = vector.extract_strided_slice %127 {offsets = [0, 0], sizes = [2, 64], strides = [1, 1]} : vector<2x256xf32> to vector<2x64xf32>
    %130 = vector.extract_strided_slice %127 {offsets = [0, 64], sizes = [2, 64], strides = [1, 1]} : vector<2x256xf32> to vector<2x64xf32>
    %131 = vector.extract_strided_slice %128 {offsets = [0, 128], sizes = [2, 64], strides = [1, 1]} : vector<2x256xf32> to vector<2x64xf32>
    %132 = vector.extract_strided_slice %127 {offsets = [0, 192], sizes = [2, 64], strides = [1, 1]} : vector<2x256xf32> to vector<2x64xf32>
    %133 = arith.mulf %130, %119 : vector<2x64xf32>
    %134 = arith.mulf %129, %131 : vector<2x64xf32>
    %135 = arith.addf %133, %134 : vector<2x64xf32>
    %136 = math.tanh %135 : vector<2x64xf32>
    %137 = arith.mulf %132, %136 : vector<2x64xf32>
    %138 = vector.extract_strided_slice %137 {offsets = [0, 32], sizes = [2, 32], strides = [1, 1]} : vector<2x64xf32> to vector<2x32xf32>
    %c0_26 = arith.constant 0 : index
    %c0_27 = arith.constant 0 : index
    %139 = vector.load %arg9[%c0_26, %c0_27] : memref<2x256xf32, #tpu.memory_space<vmem>>, vector<2x32xf32>
    tpu.vector_store %arg9[%c0_26, %c0_27], %138 {strides = array<i32>} : memref<2x256xf32, #tpu.memory_space<vmem>>, vector<2x32xf32>,
    %cst_28 = arith.constant dense<0.000000e+00> : vector<2x256xf32>
    %140 = tpu.matmul %137, %24, %cst_28 {dimension_numbers = #tpu.dot_dimension_numbers<[1], [0], [0], [1], [0, 0, 1, 1], [], []>} : vector<2x64xf32>, vector<64x256xf32>, vector<2x256xf32> -> vector<2x256xf32>
    %141 = vector.extract_strided_slice %92 {offsets = [4, 0], sizes = [2, 256], strides = [1, 1]} : vector<16x256xf32> to vector<2x256xf32>
    %142 = arith.addf %140, %141 : vector<2x256xf32>
    %143 = arith.negf %142 : vector<2x256xf32>
    %144 = math.exp %143 : vector<2x256xf32>
    %cst_29 = arith.constant 1.000000e+00 : f32
    %145 = vector.broadcast %cst_29 : f32 to vector<2x256xf32>
    %146 = arith.addf %145, %144 : vector<2x256xf32>
    %147 = arith.divf %145, %146 : vector<2x256xf32>
    %148 = math.tanh %142 : vector<2x256xf32>
    %149 = vector.extract_strided_slice %147 {offsets = [0, 0], sizes = [2, 64], strides = [1, 1]} : vector<2x256xf32> to vector<2x64xf32>
    %150 = vector.extract_strided_slice %147 {offsets = [0, 64], sizes = [2, 64], strides = [1, 1]} : vector<2x256xf32> to vector<2x64xf32>
    %151 = vector.extract_strided_slice %148 {offsets = [0, 128], sizes = [2, 64], strides = [1, 1]} : vector<2x256xf32> to vector<2x64xf32>
    %152 = vector.extract_strided_slice %147 {offsets = [0, 192], sizes = [2, 64], strides = [1, 1]} : vector<2x256xf32> to vector<2x64xf32>
    %153 = arith.mulf %150, %135 : vector<2x64xf32>
    %154 = arith.mulf %149, %151 : vector<2x64xf32>
    %155 = arith.addf %153, %154 : vector<2x64xf32>
    %156 = math.tanh %155 : vector<2x64xf32>
    %157 = arith.mulf %152, %156 : vector<2x64xf32>
    %158 = vector.extract_strided_slice %157 {offsets = [0, 32], sizes = [2, 32], strides = [1, 1]} : vector<2x64xf32> to vector<2x32xf32>
    %c0_30 = arith.constant 0 : index
    %c32 = arith.constant 32 : index
    %159 = vector.load %arg9[%c0_30, %c32] : memref<2x256xf32, #tpu.memory_space<vmem>>, vector<2x32xf32>
    tpu.vector_store %arg9[%c0_30, %c32], %158 {strides = array<i32>} : memref<2x256xf32, #tpu.memory_space<vmem>>, vector<2x32xf32>,
    %cst_31 = arith.constant dense<0.000000e+00> : vector<2x256xf32>
    %160 = tpu.matmul %157, %24, %cst_31 {dimension_numbers = #tpu.dot_dimension_numbers<[1], [0], [0], [1], [0, 0, 1, 1], [], []>} : vector<2x64xf32>, vector<64x256xf32>, vector<2x256xf32> -> vector<2x256xf32>
    %161 = vector.extract_strided_slice %92 {offsets = [6, 0], sizes = [2, 256], strides = [1, 1]} : vector<16x256xf32> to vector<2x256xf32>
    %162 = arith.addf %160, %161 : vector<2x256xf32>
    %163 = arith.negf %162 : vector<2x256xf32>
    %164 = math.exp %163 : vector<2x256xf32>
    %cst_32 = arith.constant 1.000000e+00 : f32
    %165 = vector.broadcast %cst_32 : f32 to vector<2x256xf32>
    %166 = arith.addf %165, %164 : vector<2x256xf32>
    %167 = arith.divf %165, %166 : vector<2x256xf32>
    %168 = math.tanh %162 : vector<2x256xf32>
    %169 = vector.extract_strided_slice %167 {offsets = [0, 0], sizes = [2, 64], strides = [1, 1]} : vector<2x256xf32> to vector<2x64xf32>
    %170 = vector.extract_strided_slice %167 {offsets = [0, 64], sizes = [2, 64], strides = [1, 1]} : vector<2x256xf32> to vector<2x64xf32>
    %171 = vector.extract_strided_slice %168 {offsets = [0, 128], sizes = [2, 64], strides = [1, 1]} : vector<2x256xf32> to vector<2x64xf32>
    %172 = vector.extract_strided_slice %167 {offsets = [0, 192], sizes = [2, 64], strides = [1, 1]} : vector<2x256xf32> to vector<2x64xf32>
    %173 = arith.mulf %170, %155 : vector<2x64xf32>
    %174 = arith.mulf %169, %171 : vector<2x64xf32>
    %175 = arith.addf %173, %174 : vector<2x64xf32>
    %176 = math.tanh %175 : vector<2x64xf32>
    %177 = arith.mulf %172, %176 : vector<2x64xf32>
    %178 = vector.extract_strided_slice %177 {offsets = [0, 32], sizes = [2, 32], strides = [1, 1]} : vector<2x64xf32> to vector<2x32xf32>
    %c0_33 = arith.constant 0 : index
    %c64 = arith.constant 64 : index
    %179 = vector.load %arg9[%c0_33, %c64] : memref<2x256xf32, #tpu.memory_space<vmem>>, vector<2x32xf32>
    tpu.vector_store %arg9[%c0_33, %c64], %178 {strides = array<i32>} : memref<2x256xf32, #tpu.memory_space<vmem>>, vector<2x32xf32>,
    %cst_34 = arith.constant dense<0.000000e+00> : vector<2x256xf32>
    %180 = tpu.matmul %177, %24, %cst_34 {dimension_numbers = #tpu.dot_dimension_numbers<[1], [0], [0], [1], [0, 0, 1, 1], [], []>} : vector<2x64xf32>, vector<64x256xf32>, vector<2x256xf32> -> vector<2x256xf32>
    %181 = vector.extract_strided_slice %92 {offsets = [8, 0], sizes = [2, 256], strides = [1, 1]} : vector<16x256xf32> to vector<2x256xf32>
    %182 = arith.addf %180, %181 : vector<2x256xf32>
    %183 = arith.negf %182 : vector<2x256xf32>
    %184 = math.exp %183 : vector<2x256xf32>
    %cst_35 = arith.constant 1.000000e+00 : f32
    %185 = vector.broadcast %cst_35 : f32 to vector<2x256xf32>
    %186 = arith.addf %185, %184 : vector<2x256xf32>
    %187 = arith.divf %185, %186 : vector<2x256xf32>
    %188 = math.tanh %182 : vector<2x256xf32>
    %189 = vector.extract_strided_slice %187 {offsets = [0, 0], sizes = [2, 64], strides = [1, 1]} : vector<2x256xf32> to vector<2x64xf32>
    %190 = vector.extract_strided_slice %187 {offsets = [0, 64], sizes = [2, 64], strides = [1, 1]} : vector<2x256xf32> to vector<2x64xf32>
    %191 = vector.extract_strided_slice %188 {offsets = [0, 128], sizes = [2, 64], strides = [1, 1]} : vector<2x256xf32> to vector<2x64xf32>
    %192 = vector.extract_strided_slice %187 {offsets = [0, 192], sizes = [2, 64], strides = [1, 1]} : vector<2x256xf32> to vector<2x64xf32>
    %193 = arith.mulf %190, %175 : vector<2x64xf32>
    %194 = arith.mulf %189, %191 : vector<2x64xf32>
    %195 = arith.addf %193, %194 : vector<2x64xf32>
    %196 = math.tanh %195 : vector<2x64xf32>
    %197 = arith.mulf %192, %196 : vector<2x64xf32>
    %198 = vector.extract_strided_slice %197 {offsets = [0, 32], sizes = [2, 32], strides = [1, 1]} : vector<2x64xf32> to vector<2x32xf32>
    %c0_36 = arith.constant 0 : index
    %c96 = arith.constant 96 : index
    %199 = vector.load %arg9[%c0_36, %c96] : memref<2x256xf32, #tpu.memory_space<vmem>>, vector<2x32xf32>
    tpu.vector_store %arg9[%c0_36, %c96], %198 {strides = array<i32>} : memref<2x256xf32, #tpu.memory_space<vmem>>, vector<2x32xf32>,
    %cst_37 = arith.constant dense<0.000000e+00> : vector<2x256xf32>
    %200 = tpu.matmul %197, %24, %cst_37 {dimension_numbers = #tpu.dot_dimension_numbers<[1], [0], [0], [1], [0, 0, 1, 1], [], []>} : vector<2x64xf32>, vector<64x256xf32>, vector<2x256xf32> -> vector<2x256xf32>
    %201 = vector.extract_strided_slice %92 {offsets = [10, 0], sizes = [2, 256], strides = [1, 1]} : vector<16x256xf32> to vector<2x256xf32>
    %202 = arith.addf %200, %201 : vector<2x256xf32>
    %203 = arith.negf %202 : vector<2x256xf32>
    %204 = math.exp %203 : vector<2x256xf32>
    %cst_38 = arith.constant 1.000000e+00 : f32
    %205 = vector.broadcast %cst_38 : f32 to vector<2x256xf32>
    %206 = arith.addf %205, %204 : vector<2x256xf32>
    %207 = arith.divf %205, %206 : vector<2x256xf32>
    %208 = math.tanh %202 : vector<2x256xf32>
    %209 = vector.extract_strided_slice %207 {offsets = [0, 0], sizes = [2, 64], strides = [1, 1]} : vector<2x256xf32> to vector<2x64xf32>
    %210 = vector.extract_strided_slice %207 {offsets = [0, 64], sizes = [2, 64], strides = [1, 1]} : vector<2x256xf32> to vector<2x64xf32>
    %211 = vector.extract_strided_slice %208 {offsets = [0, 128], sizes = [2, 64], strides = [1, 1]} : vector<2x256xf32> to vector<2x64xf32>
    %212 = vector.extract_strided_slice %207 {offsets = [0, 192], sizes = [2, 64], strides = [1, 1]} : vector<2x256xf32> to vector<2x64xf32>
    %213 = arith.mulf %210, %195 : vector<2x64xf32>
    %214 = arith.mulf %209, %211 : vector<2x64xf32>
    %215 = arith.addf %213, %214 : vector<2x64xf32>
    %216 = math.tanh %215 : vector<2x64xf32>
    %217 = arith.mulf %212, %216 : vector<2x64xf32>
    %218 = vector.extract_strided_slice %217 {offsets = [0, 32], sizes = [2, 32], strides = [1, 1]} : vector<2x64xf32> to vector<2x32xf32>
    %c0_39 = arith.constant 0 : index
    %c128 = arith.constant 128 : index
    %219 = vector.load %arg9[%c0_39, %c128] : memref<2x256xf32, #tpu.memory_space<vmem>>, vector<2x32xf32>
    tpu.vector_store %arg9[%c0_39, %c128], %218 {strides = array<i32>} : memref<2x256xf32, #tpu.memory_space<vmem>>, vector<2x32xf32>,
    %cst_40 = arith.constant dense<0.000000e+00> : vector<2x256xf32>
    %220 = tpu.matmul %217, %24, %cst_40 {dimension_numbers = #tpu.dot_dimension_numbers<[1], [0], [0], [1], [0, 0, 1, 1], [], []>} : vector<2x64xf32>, vector<64x256xf32>, vector<2x256xf32> -> vector<2x256xf32>
    %221 = vector.extract_strided_slice %92 {offsets = [12, 0], sizes = [2, 256], strides = [1, 1]} : vector<16x256xf32> to vector<2x256xf32>
    %222 = arith.addf %220, %221 : vector<2x256xf32>
    %223 = arith.negf %222 : vector<2x256xf32>
    %224 = math.exp %223 : vector<2x256xf32>
    %cst_41 = arith.constant 1.000000e+00 : f32
    %225 = vector.broadcast %cst_41 : f32 to vector<2x256xf32>
    %226 = arith.addf %225, %224 : vector<2x256xf32>
    %227 = arith.divf %225, %226 : vector<2x256xf32>
    %228 = math.tanh %222 : vector<2x256xf32>
    %229 = vector.extract_strided_slice %227 {offsets = [0, 0], sizes = [2, 64], strides = [1, 1]} : vector<2x256xf32> to vector<2x64xf32>
    %230 = vector.extract_strided_slice %227 {offsets = [0, 64], sizes = [2, 64], strides = [1, 1]} : vector<2x256xf32> to vector<2x64xf32>
    %231 = vector.extract_strided_slice %228 {offsets = [0, 128], sizes = [2, 64], strides = [1, 1]} : vector<2x256xf32> to vector<2x64xf32>
    %232 = vector.extract_strided_slice %227 {offsets = [0, 192], sizes = [2, 64], strides = [1, 1]} : vector<2x256xf32> to vector<2x64xf32>
    %233 = arith.mulf %230, %215 : vector<2x64xf32>
    %234 = arith.mulf %229, %231 : vector<2x64xf32>
    %235 = arith.addf %233, %234 : vector<2x64xf32>
    %236 = math.tanh %235 : vector<2x64xf32>
    %237 = arith.mulf %232, %236 : vector<2x64xf32>
    %238 = vector.extract_strided_slice %237 {offsets = [0, 32], sizes = [2, 32], strides = [1, 1]} : vector<2x64xf32> to vector<2x32xf32>
    %c0_42 = arith.constant 0 : index
    %c160 = arith.constant 160 : index
    %239 = vector.load %arg9[%c0_42, %c160] : memref<2x256xf32, #tpu.memory_space<vmem>>, vector<2x32xf32>
    tpu.vector_store %arg9[%c0_42, %c160], %238 {strides = array<i32>} : memref<2x256xf32, #tpu.memory_space<vmem>>, vector<2x32xf32>,
    %cst_43 = arith.constant dense<0.000000e+00> : vector<2x256xf32>
    %240 = tpu.matmul %237, %24, %cst_43 {dimension_numbers = #tpu.dot_dimension_numbers<[1], [0], [0], [1], [0, 0, 1, 1], [], []>} : vector<2x64xf32>, vector<64x256xf32>, vector<2x256xf32> -> vector<2x256xf32>
    %241 = vector.extract_strided_slice %92 {offsets = [14, 0], sizes = [2, 256], strides = [1, 1]} : vector<16x256xf32> to vector<2x256xf32>
    %242 = arith.addf %240, %241 : vector<2x256xf32>
    %243 = arith.negf %242 : vector<2x256xf32>
    %244 = math.exp %243 : vector<2x256xf32>
    %cst_44 = arith.constant 1.000000e+00 : f32
    %245 = vector.broadcast %cst_44 : f32 to vector<2x256xf32>
    %246 = arith.addf %245, %244 : vector<2x256xf32>
    %247 = arith.divf %245, %246 : vector<2x256xf32>
    %248 = math.tanh %242 : vector<2x256xf32>
    %249 = vector.extract_strided_slice %247 {offsets = [0, 0], sizes = [2, 64], strides = [1, 1]} : vector<2x256xf32> to vector<2x64xf32>
    %250 = vector.extract_strided_slice %247 {offsets = [0, 64], sizes = [2, 64], strides = [1, 1]} : vector<2x256xf32> to vector<2x64xf32>
    %251 = vector.extract_strided_slice %248 {offsets = [0, 128], sizes = [2, 64], strides = [1, 1]} : vector<2x256xf32> to vector<2x64xf32>
    %252 = vector.extract_strided_slice %247 {offsets = [0, 192], sizes = [2, 64], strides = [1, 1]} : vector<2x256xf32> to vector<2x64xf32>
    %253 = arith.mulf %250, %235 : vector<2x64xf32>
    %254 = arith.mulf %249, %251 : vector<2x64xf32>
    %255 = arith.addf %253, %254 : vector<2x64xf32>
    %256 = math.tanh %255 : vector<2x64xf32>
    %257 = arith.mulf %252, %256 : vector<2x64xf32>
    %258 = vector.extract_strided_slice %257 {offsets = [0, 32], sizes = [2, 32], strides = [1, 1]} : vector<2x64xf32> to vector<2x32xf32>
    %c0_45 = arith.constant 0 : index
    %c192 = arith.constant 192 : index
    %259 = vector.load %arg9[%c0_45, %c192] : memref<2x256xf32, #tpu.memory_space<vmem>>, vector<2x32xf32>
    tpu.vector_store %arg9[%c0_45, %c192], %258 {strides = array<i32>} : memref<2x256xf32, #tpu.memory_space<vmem>>, vector<2x32xf32>,
    %260 = vector.extract_strided_slice %257 {offsets = [0, 0], sizes = [2, 32], strides = [1, 1]} : vector<2x64xf32> to vector<2x32xf32>
    %261 = vector.extract_strided_slice %255 {offsets = [0, 0], sizes = [2, 32], strides = [1, 1]} : vector<2x64xf32> to vector<2x32xf32>
    %cst_46 = arith.constant dense<0.000000e+00> : vector<2x256xf32>
    %262 = tpu.matmul %257, %24, %cst_46 {dimension_numbers = #tpu.dot_dimension_numbers<[1], [0], [0], [1], [0, 0, 1, 1], [], []>} : vector<2x64xf32>, vector<64x256xf32>, vector<2x256xf32> -> vector<2x256xf32>
    %263 = vector.broadcast %33 : vector<1x256xf32> to vector<2x256xf32>
    %264 = arith.addf %262, %263 : vector<2x256xf32>
    %265 = arith.negf %264 : vector<2x256xf32>
    %266 = math.exp %265 : vector<2x256xf32>
    %cst_47 = arith.constant 1.000000e+00 : f32
    %267 = vector.broadcast %cst_47 : f32 to vector<2x256xf32>
    %268 = arith.addf %267, %266 : vector<2x256xf32>
    %269 = arith.divf %267, %268 : vector<2x256xf32>
    %270 = math.tanh %264 : vector<2x256xf32>
    %271 = vector.extract_strided_slice %269 {offsets = [0, 0], sizes = [2, 64], strides = [1, 1]} : vector<2x256xf32> to vector<2x64xf32>
    %272 = vector.extract_strided_slice %269 {offsets = [0, 64], sizes = [2, 64], strides = [1, 1]} : vector<2x256xf32> to vector<2x64xf32>
    %273 = vector.extract_strided_slice %270 {offsets = [0, 128], sizes = [2, 64], strides = [1, 1]} : vector<2x256xf32> to vector<2x64xf32>
    %274 = vector.extract_strided_slice %269 {offsets = [0, 192], sizes = [2, 64], strides = [1, 1]} : vector<2x256xf32> to vector<2x64xf32>
    %275 = arith.mulf %272, %255 : vector<2x64xf32>
    %276 = arith.mulf %271, %273 : vector<2x64xf32>
    %277 = arith.addf %275, %276 : vector<2x64xf32>
    %278 = math.tanh %277 : vector<2x64xf32>
    %279 = arith.mulf %274, %278 : vector<2x64xf32>
    %280 = vector.extract_strided_slice %279 {offsets = [0, 32], sizes = [2, 32], strides = [1, 1]} : vector<2x64xf32> to vector<2x32xf32>
    %c0_48 = arith.constant 0 : index
    %c224 = arith.constant 224 : index
    %281 = vector.load %arg9[%c0_48, %c224] : memref<2x256xf32, #tpu.memory_space<vmem>>, vector<2x32xf32>
    tpu.vector_store %arg9[%c0_48, %c224], %280 {strides = array<i32>} : memref<2x256xf32, #tpu.memory_space<vmem>>, vector<2x32xf32>,
    %c0_49 = arith.constant 0 : index
    %c0_50 = arith.constant 0 : index
    %c0_51 = arith.constant 0 : index
    %282 = vector.load %arg10[%c0_49, %c0_50, %c0_51] : memref<2x2x32xf32, #tpu.memory_space<vmem>>, vector<1x2x32xf32>
    %283 = vector.shape_cast %282 : vector<1x2x32xf32> to vector<2x32xf32>
    %284 = vector.shape_cast %260 : vector<2x32xf32> to vector<1x2x32xf32>
    tpu.vector_store %arg10[%c0_49, %c0_50, %c0_51], %284 {strides = array<i32>} : memref<2x2x32xf32, #tpu.memory_space<vmem>>, vector<1x2x32xf32>,
    %285 = vector.extract_strided_slice %279 {offsets = [0, 32], sizes = [2, 32], strides = [1, 1]} : vector<2x64xf32> to vector<2x32xf32>
    %c1 = arith.constant 1 : index
    %c0_52 = arith.constant 0 : index
    %c0_53 = arith.constant 0 : index
    %286 = vector.load %arg10[%c1, %c0_52, %c0_53] : memref<2x2x32xf32, #tpu.memory_space<vmem>>, vector<1x2x32xf32>
    %287 = vector.shape_cast %286 : vector<1x2x32xf32> to vector<2x32xf32>
    %288 = vector.shape_cast %285 : vector<2x32xf32> to vector<1x2x32xf32>
    tpu.vector_store %arg10[%c1, %c0_52, %c0_53], %288 {strides = array<i32>} : memref<2x2x32xf32, #tpu.memory_space<vmem>>, vector<1x2x32xf32>,
    %c0_54 = arith.constant 0 : index
    %c0_55 = arith.constant 0 : index
    %c0_56 = arith.constant 0 : index
    %289 = vector.load %arg11[%c0_54, %c0_55, %c0_56] : memref<2x2x32xf32, #tpu.memory_space<vmem>>, vector<1x2x32xf32>
    %290 = vector.shape_cast %289 : vector<1x2x32xf32> to vector<2x32xf32>
    %291 = vector.shape_cast %261 : vector<2x32xf32> to vector<1x2x32xf32>
    tpu.vector_store %arg11[%c0_54, %c0_55, %c0_56], %291 {strides = array<i32>} : memref<2x2x32xf32, #tpu.memory_space<vmem>>, vector<1x2x32xf32>,
    %292 = vector.extract_strided_slice %277 {offsets = [0, 32], sizes = [2, 32], strides = [1, 1]} : vector<2x64xf32> to vector<2x32xf32>
    %c1_57 = arith.constant 1 : index
    %c0_58 = arith.constant 0 : index
    %c0_59 = arith.constant 0 : index
    %293 = vector.load %arg11[%c1_57, %c0_58, %c0_59] : memref<2x2x32xf32, #tpu.memory_space<vmem>>, vector<1x2x32xf32>
    %294 = vector.shape_cast %293 : vector<1x2x32xf32> to vector<2x32xf32>
    %295 = vector.shape_cast %292 : vector<2x32xf32> to vector<1x2x32xf32>
    tpu.vector_store %arg11[%c1_57, %c0_58, %c0_59], %295 {strides = array<i32>} : memref<2x2x32xf32, #tpu.memory_space<vmem>>, vector<1x2x32xf32>,
    return
  }
  func.func @transform_0(%arg0: i32) -> (i32, i32) {
    %c0_i32 = arith.constant 0 : i32
    %c0_i32_0 = arith.constant 0 : i32
    %c0_i32_1 = arith.constant 0 : i32
    return %c0_i32, %c0_i32_0 : i32, i32
  }
  func.func @transform_1(%arg0: i32) -> (i32, i32) {
    %c0_i32 = arith.constant 0 : i32
    %c0_i32_0 = arith.constant 0 : i32
    %c0_i32_1 = arith.constant 0 : i32
    return %c0_i32, %c0_i32_0 : i32, i32
  }
  func.func @transform_2(%arg0: i32) -> (i32, i32) {
    %c0_i32 = arith.constant 0 : i32
    %c0_i32_0 = arith.constant 0 : i32
    %c0_i32_1 = arith.constant 0 : i32
    return %c0_i32, %c0_i32_0 : i32, i32
  }
  func.func @transform_3(%arg0: i32) -> (i32, i32) {
    %c0_i32 = arith.constant 0 : i32
    %c0_i32_0 = arith.constant 0 : i32
    %c0_i32_1 = arith.constant 0 : i32
    return %c0_i32, %c0_i32_0 : i32, i32
  }
  func.func @transform_4(%arg0: i32) -> (i32, i32) {
    %c0_i32 = arith.constant 0 : i32
    %c0_i32_0 = arith.constant 0 : i32
    %c0_i32_1 = arith.constant 0 : i32
    return %c0_i32, %c0_i32_0 : i32, i32
  }
  func.func @transform_5(%arg0: i32) -> (i32, i32) {
    %c0_i32 = arith.constant 0 : i32
    %c0_i32_0 = arith.constant 0 : i32
    %c0_i32_1 = arith.constant 0 : i32
    return %c0_i32, %c0_i32_0 : i32, i32
  }
  func.func @transform_6(%arg0: i32) -> (i32, i32) {
    %c0_i32 = arith.constant 0 : i32
    %c0_i32_0 = arith.constant 0 : i32
    %c0_i32_1 = arith.constant 0 : i32
    return %c0_i32, %c0_i32_0 : i32, i32
  }
  func.func @transform_7(%arg0: i32) -> (i32, i32) {
    %c0_i32 = arith.constant 0 : i32
    %c0_i32_0 = arith.constant 0 : i32
    %c0_i32_1 = arith.constant 0 : i32
    return %c0_i32, %c0_i32_0 : i32, i32
  }
  func.func @transform_8(%arg0: i32) -> (i32, i32) {
    %c0_i32 = arith.constant 0 : i32
    %c0_i32_0 = arith.constant 0 : i32
    %c0_i32_1 = arith.constant 0 : i32
    return %c0_i32, %c0_i32_0 : i32, i32
  }
  func.func @transform_9(%arg0: i32) -> (i32, i32, i32) {
    %c0_i32 = arith.constant 0 : i32
    %c0_i32_0 = arith.constant 0 : i32
    %c0_i32_1 = arith.constant 0 : i32
    %c0_i32_2 = arith.constant 0 : i32
    return %c0_i32, %c0_i32_0, %c0_i32_1 : i32, i32, i32
  }
  func.func @transform_10(%arg0: i32) -> (i32, i32, i32) {
    %c0_i32 = arith.constant 0 : i32
    %c0_i32_0 = arith.constant 0 : i32
    %c0_i32_1 = arith.constant 0 : i32
    %c0_i32_2 = arith.constant 0 : i32
    return %c0_i32, %c0_i32_0, %c0_i32_1 : i32, i32, i32
  }
}

</mosaic_0001>

<llo_original>
// kernel: encoder_forward.1
$region0: #{encoder_forward.1}
  #allocation0 [shape = 'u32[]', space=smem, size = 0x4, offset = 0x4, fixed_abs, tag = 'smem constant byte address 0x4 - core index']
  #allocation1 [shape = 'u32[144,128]{1,0:T(1,128)}', space=vmem, size = 0x12000, scoped, tag = 'internal scratch']
  %s0 = inlined_call_operand.hbm [shape: s32[2,8], index: 0, kind: input, shape index: {}]
  %s1 = inlined_call_operand.hbm [shape: f32[16,16], index: 1, kind: input, shape index: {}]
  %s2 = inlined_call_operand.hbm [shape: f32[16,128], index: 2, kind: input, shape index: {}]
  %s3 = inlined_call_operand.hbm [shape: f32[32,128], index: 3, kind: input, shape index: {}]
  %s4 = inlined_call_operand.vmem [shape: f32[1,128], index: 4, kind: input, shape index: {}]
  %s5 = inlined_call_operand.hbm [shape: f32[32,128], index: 5, kind: input, shape index: {}]
  %s6 = inlined_call_operand.hbm [shape: f32[32,128], index: 6, kind: input, shape index: {}]
  %s7 = inlined_call_operand.vmem [shape: f32[1,128], index: 7, kind: input, shape index: {}]
  %s8 = inlined_call_operand.vmem [shape: f32[2,256], index: 8, kind: output, shape index: {0}]
  %s9 = inlined_call_operand.hbm [shape: f32[2,2,32], index: 9, kind: output, shape index: {1}]
  %s10 = inlined_call_operand.hbm [shape: f32[2,2,32], index: 10, kind: output, shape index: {2}]
  %11 = xla_tuple %s8, %s9, %s10
  %s12 = sld [smem:[#allocation0]]
  $region82: #{encoder_forward.1} parent=0
    _
  %s14 = ssub.s32 1, %s12
  %s15 = scalar_select 0, %s14, %s12
  $region1: #{encoder_forward.1} parent=0
    #allocation2 [shape = 'u8[1024]{0}', space=vmem, size = 0x400, scoped, tag = 'input window, operand 0, single buffered']
    #allocation3 [shape = 's32[1]{0}', space=sflag, size = 0x4, scoped, tag = 'scoped memory for encoder_forward.1']
    #allocation4 [shape = 's32[1]{0}', space=sflag, size = 0x4, scoped, tag = 'scoped memory for encoder_forward.1']
    #allocation5 [shape = 'u8[8192]{0}', space=vmem, size = 0x2000, scoped, tag = 'input window, operand 1, single buffered']
    #allocation6 [shape = 's32[1]{0}', space=sflag, size = 0x4, scoped, tag = 'scoped memory for encoder_forward.1']
    #allocation7 [shape = 'u8[8192]{0}', space=vmem, size = 0x2000, scoped, tag = 'input window, operand 2, single buffered']
    #allocation8 [shape = 'u8[16384]{0}', space=vmem, size = 0x4000, scoped, tag = 'input window, operand 3, single buffered']
    #allocation9 [shape = 's32[1]{0}', space=sflag, size = 0x4, scoped, tag = 'scoped memory for encoder_forward.1']
    #allocation10 [shape = 'u8[16384]{0}', space=vmem, size = 0x4000, scoped, tag = 'input window, operand 5, single buffered']
    #allocation11 [shape = 'u8[16384]{0}', space=vmem, size = 0x4000, scoped, tag = 'input window, operand 6, single buffered']
    #allocation12 [shape = 's32[1]{0}', space=sflag, size = 0x4, scoped, tag = 'scoped memory for encoder_forward.1']
    #allocation13 [shape = 'u8[2048]{0}', space=vmem, size = 0x800, scoped, tag = 'output window, operand 1, single buffered']
    #allocation14 [shape = 'u8[2048]{0}', space=vmem, size = 0x800, scoped, tag = 'output window, operand 2, single buffered']
    #allocation15 [shape = 's32[1]{0}', space=sflag, size = 0x4, scoped, tag = 'scoped memory for encoder_forward.1']
    %16 = vsyncpa [#allocation3], 0
    %17 = vsyncpa [#allocation6], 0
    %18 = vsyncpa [#allocation9], 0
    %19 = vsyncpa [#allocation12], 0
    %20 = vsyncpa [#allocation4], 0
    %21 = vsyncpa [#allocation15], 0
    // Predicated region
    $region2: #{encoder_forward.1} parent=1 // pred_check
      _
    $region3: #{encoder_forward.1} parent=1 // pred_check_branch
      %23 = sbr.rel (0) target = $region5
    $region4: #{encoder_forward.1} parent=1 // pred_region
      %s25 = ssub.s32 32, 32
      %26 = vsyncadd [#allocation3], %s25
      %s28 = sshll.u32 [#allocation2], 4
      %s29 = int_to_ptr.vmem [resolvable:$true] %s28
      %31 = dma.hbm_to_vmem [thread:$0]  %s0, 32, %s29, [#allocation3]
    $region5: #{encoder_forward.1} parent=1 // pred_fallthru
      _
    // Predicated region
    $region6: #{encoder_forward.1} parent=1 // pred_check
      _
    $region7: #{encoder_forward.1} parent=1 // pred_check_branch
      %33 = sbr.rel (0) target = $region9
    $region8: #{encoder_forward.1} parent=1 // pred_region
      %s35 = ssub.s32 256, 256
      %36 = vsyncadd [#allocation6], %s35
      %s37 = sshll.u32 [#allocation5], 4
      %s38 = int_to_ptr.vmem [resolvable:$true] %s37
      %43 = dma.hbm_to_vmem [thread:$0]  %s1, 256, %s38, [#allocation6], 128, 128, 8
    $region9: #{encoder_forward.1} parent=1 // pred_fallthru
      _
    // Predicated region
    $region10: #{encoder_forward.1} parent=1 // pred_check
      _
    $region11: #{encoder_forward.1} parent=1 // pred_check_branch
      %45 = sbr.rel (0) target = $region13
    $region12: #{encoder_forward.1} parent=1 // pred_region
      %s47 = ssub.s32 256, 256
      %48 = vsyncadd [#allocation6], %s47
      %s49 = sshll.u32 [#allocation7], 4
      %s50 = int_to_ptr.vmem [resolvable:$true] %s49
      %55 = dma.hbm_to_vmem [thread:$0]  %s2, 256, %s50, [#allocation6], 128, 128, 8
    $region13: #{encoder_forward.1} parent=1 // pred_fallthru
      _
    // Predicated region
    $region14: #{encoder_forward.1} parent=1 // pred_check
      _
    $region15: #{encoder_forward.1} parent=1 // pred_check_branch
      %57 = sbr.rel (0) target = $region17
    $region16: #{encoder_forward.1} parent=1 // pred_region
      %s59 = ssub.s32 512, 512
      %60 = vsyncadd [#allocation9], %s59
      %s61 = sshll.u32 [#allocation8], 4
      %s62 = int_to_ptr.vmem [resolvable:$true] %s61
      %67 = dma.hbm_to_vmem [thread:$0]  %s3, 512, %s62, [#allocation9], 128, 128, 8
    $region17: #{encoder_forward.1} parent=1 // pred_fallthru
      _
    // Predicated region
    $region18: #{encoder_forward.1} parent=1 // pred_check
      _
    $region19: #{encoder_forward.1} parent=1 // pred_check_branch
      %69 = sbr.rel (0) target = $region21
    $region20: #{encoder_forward.1} parent=1 // pred_region
      _
    $region21: #{encoder_forward.1} parent=1 // pred_fallthru
      _
    // Predicated region
    $region22: #{encoder_forward.1} parent=1 // pred_check
      _
    $region23: #{encoder_forward.1} parent=1 // pred_check_branch
      %71 = sbr.rel (0) target = $region25
    $region24: #{encoder_forward.1} parent=1 // pred_region
      %s73 = ssub.s32 512, 512
      %74 = vsyncadd [#allocation9], %s73
      %s75 = sshll.u32 [#allocation10], 4
      %s76 = int_to_ptr.vmem [resolvable:$true] %s75
      %81 = dma.hbm_to_vmem [thread:$0]  %s5, 512, %s76, [#allocation9], 128, 128, 8
    $region25: #{encoder_forward.1} parent=1 // pred_fallthru
      _
    // Predicated region
    $region26: #{encoder_forward.1} parent=1 // pred_check
      _
    $region27: #{encoder_forward.1} parent=1 // pred_check_branch
      %83 = sbr.rel (0) target = $region29
    $region28: #{encoder_forward.1} parent=1 // pred_region
      %s85 = ssub.s32 512, 512
      %86 = vsyncadd [#allocation12], %s85
      %s87 = sshll.u32 [#allocation11], 4
      %s88 = int_to_ptr.vmem [resolvable:$true] %s87
      %93 = dma.hbm_to_vmem [thread:$0]  %s6, 512, %s88, [#allocation12], 128, 128, 8
    $region29: #{encoder_forward.1} parent=1 // pred_fallthru
      _
    // Predicated region
    $region30: #{encoder_forward.1} parent=1 // pred_check
      _
    $region31: #{encoder_forward.1} parent=1 // pred_check_branch
      %95 = sbr.rel (0) target = $region33
    $region32: #{encoder_forward.1} parent=1 // pred_region
      _
    $region33: #{encoder_forward.1} parent=1 // pred_fallthru
      _
    // Predicated region
    $region34: #{encoder_forward.1} parent=1 // pred_check
      _
    $region35: #{encoder_forward.1} parent=1 // pred_check_branch
      %97 = sbr.rel (0) target = $region37
    $region36: #{encoder_forward.1} parent=1 // pred_region
      %98 = dma.done [#allocation3], 32
    $region37: #{encoder_forward.1} parent=1 // pred_fallthru
      _
    // Predicated region
    $region38: #{encoder_forward.1} parent=1 // pred_check
      _
    $region39: #{encoder_forward.1} parent=1 // pred_check_branch
      %100 = sbr.rel (0) target = $region41
    $region40: #{encoder_forward.1} parent=1 // pred_region
      %101 = dma.done [#allocation6], 256
    $region41: #{encoder_forward.1} parent=1 // pred_fallthru
      _
    // Predicated region
    $region42: #{encoder_forward.1} parent=1 // pred_check
      _
    $region43: #{encoder_forward.1} parent=1 // pred_check_branch
      %103 = sbr.rel (0) target = $region45
    $region44: #{encoder_forward.1} parent=1 // pred_region
      %104 = dma.done [#allocation6], 256
    $region45: #{encoder_forward.1} parent=1 // pred_fallthru
      _
    // Predicated region
    $region46: #{encoder_forward.1} parent=1 // pred_check
      _
    $region47: #{encoder_forward.1} parent=1 // pred_check_branch
      %106 = sbr.rel (0) target = $region49
    $region48: #{encoder_forward.1} parent=1 // pred_region
      %107 = dma.done [#allocation9], 512
    $region49: #{encoder_forward.1} parent=1 // pred_fallthru
      _
    // Predicated region
    $region50: #{encoder_forward.1} parent=1 // pred_check
      _
    $region51: #{encoder_forward.1} parent=1 // pred_check_branch
      %109 = sbr.rel (0) target = $region53
    $region52: #{encoder_forward.1} parent=1 // pred_region
      %110 = dma.done [#allocation9], 512
    $region53: #{encoder_forward.1} parent=1 // pred_fallthru
      _
    // Predicated region
    $region54: #{encoder_forward.1} parent=1 // pred_check
      _
    $region55: #{encoder_forward.1} parent=1 // pred_check_branch
      %112 = sbr.rel (0) target = $region57
    $region56: #{encoder_forward.1} parent=1 // pred_region
      %113 = dma.done [#allocation12], 512
    $region57: #{encoder_forward.1} parent=1 // pred_fallthru
      _
    %v114 = vld [vmem:[#allocation8] sm:$0xff]
    %v115 = vld [vmem:[#allocation8 + $0x8] sm:$0xff]
    %v116 = vld [vmem:[#allocation8 + $0x10] sm:$0xff]
    %v117 = vld [vmem:[#allocation8 + $0x18] sm:$0xff]
    %v118 = vld [vmem:[#allocation10] sm:$0xff]
    %v119 = vld [vmem:[#allocation10 + $0x8] sm:$0xff]
    %v120 = vld [vmem:[#allocation10 + $0x10] sm:$0xff]
    %v121 = vld [vmem:[#allocation10 + $0x18] sm:$0xff]
    %v122 = vld [vmem:[#allocation11] sm:$0xff]
    %v123 = vld [vmem:[#allocation11 + $0x8] sm:$0xff]
    %v124 = vld [vmem:[#allocation11 + $0x10] sm:$0xff]
    %v125 = vld [vmem:[#allocation11 + $0x18] sm:$0xff]
    %v126 = vld [vmem:[%s4] sm:$0x1]
    %v127 = vld [vmem:[%s7] sm:$0x1]
    %132 = vrot.lane.b32.xlu0 %v118, 32
    %v133 = vpop.permute.xlu0 %132
    %134 = vrot.lane.b32.xlu0 %v119, 32
    %v135 = vpop.permute.xlu0 %134
    %136 = vrot.lane.b32.xlu0 %v120, 32
    %v137 = vpop.permute.xlu0 %136
    %138 = vrot.lane.b32.xlu0 %v121, 32
    %v139 = vpop.permute.xlu0 %138
    %148 = vrot.lane.b32.xlu0 %v114, 32
    %v149 = vpop.permute.xlu0 %148
    %150 = vrot.lane.b32.xlu0 %v115, 32
    %v151 = vpop.permute.xlu0 %150
    %152 = vrot.lane.b32.xlu0 %v116, 32
    %v153 = vpop.permute.xlu0 %152
    %154 = vrot.lane.b32.xlu0 %v117, 32
    %v155 = vpop.permute.xlu0 %154
    %160 = vrot.lane.b32.xlu0 %v118, 64
    %v161 = vpop.permute.xlu0 %160
    %162 = vrot.lane.b32.xlu0 %v119, 64
    %v163 = vpop.permute.xlu0 %162
    %164 = vrot.lane.b32.xlu0 %v120, 64
    %v165 = vpop.permute.xlu0 %164
    %166 = vrot.lane.b32.xlu0 %v121, 64
    %v167 = vpop.permute.xlu0 %166
    %172 = vrot.lane.b32.xlu0 %v114, 64
    %v173 = vpop.permute.xlu0 %172
    %174 = vrot.lane.b32.xlu0 %v115, 64
    %v175 = vpop.permute.xlu0 %174
    %176 = vrot.lane.b32.xlu0 %v116, 64
    %v177 = vpop.permute.xlu0 %176
    %178 = vrot.lane.b32.xlu0 %v117, 64
    %v179 = vpop.permute.xlu0 %178
    %184 = vrot.lane.b32.xlu0 %v118, 96
    %v185 = vpop.permute.xlu0 %184
    %186 = vrot.lane.b32.xlu0 %v119, 96
    %v187 = vpop.permute.xlu0 %186
    %188 = vrot.lane.b32.xlu0 %v120, 96
    %v189 = vpop.permute.xlu0 %188
    %190 = vrot.lane.b32.xlu0 %v121, 96
    %v191 = vpop.permute.xlu0 %190
    %196 = vrot.lane.b32.xlu0 %v114, 96
    %v197 = vpop.permute.xlu0 %196
    %198 = vrot.lane.b32.xlu0 %v115, 96
    %v199 = vpop.permute.xlu0 %198
    %200 = vrot.lane.b32.xlu0 %v116, 96
    %v201 = vpop.permute.xlu0 %200
    %202 = vrot.lane.b32.xlu0 %v117, 96
    %v203 = vpop.permute.xlu0 %202
    %vm208 = vcmask 261120
    %v209 = vsel %vm208, %v114, %v133
    %v210 = vsel %vm208, %v115, %v135
    %v211 = vsel %vm208, %v116, %v137
    %v212 = vsel %vm208, %v117, %v139
    %vm213 = vcmask 523264
    %v214 = vsel %vm213, %v209, %v149
    %v215 = vsel %vm213, %v210, %v151
    %v216 = vsel %vm213, %v211, %v153
    %v217 = vsel %vm213, %v212, %v155
    %vm218 = vcmask 785408
    %v219 = vsel %vm218, %v214, %v161
    %v220 = vsel %vm218, %v215, %v163
    %v221 = vsel %vm218, %v216, %v165
    %v222 = vsel %vm218, %v217, %v167
    %v223 = vsel %vm208, %v173, %v185
    %v224 = vsel %vm208, %v175, %v187
    %v225 = vsel %vm208, %v177, %v189
    %v226 = vsel %vm208, %v179, %v191
    %v227 = vsel %vm213, %v223, %v197
    %v228 = vsel %vm213, %v224, %v199
    %v229 = vsel %vm213, %v225, %v201
    %v230 = vsel %vm213, %v226, %v203
    %v231 = vsel %vm218, %v227, %v118
    %v232 = vsel %vm218, %v228, %v119
    %v233 = vsel %vm218, %v229, %v120
    %v234 = vsel %vm218, %v230, %v121
    %239 = vrot.lane.b32.xlu0 %v122, 32
    %v240 = vpop.permute.xlu0 %239
    %241 = vrot.lane.b32.xlu0 %v123, 32
    %v242 = vpop.permute.xlu0 %241
    %243 = vrot.lane.b32.xlu0 %v124, 32
    %v244 = vpop.permute.xlu0 %243
    %245 = vrot.lane.b32.xlu0 %v125, 32
    %v246 = vpop.permute.xlu0 %245
    %251 = vrot.lane.b32.xlu0 %v122, 64
    %v252 = vpop.permute.xlu0 %251
    %253 = vrot.lane.b32.xlu0 %v123, 64
    %v254 = vpop.permute.xlu0 %253
    %255 = vrot.lane.b32.xlu0 %v124, 64
    %v256 = vpop.permute.xlu0 %255
    %257 = vrot.lane.b32.xlu0 %v125, 64
    %v258 = vpop.permute.xlu0 %257
    %263 = vrot.lane.b32.xlu0 %v122, 96
    %v264 = vpop.permute.xlu0 %263
    %265 = vrot.lane.b32.xlu0 %v123, 96
    %v266 = vpop.permute.xlu0 %265
    %267 = vrot.lane.b32.xlu0 %v124, 96
    %v268 = vpop.permute.xlu0 %267
    %269 = vrot.lane.b32.xlu0 %v125, 96
    %v270 = vpop.permute.xlu0 %269
    %v275 = vsel %vm208, 0.0, %v240
    %v276 = vsel %vm208, 0.0, %v242
    %v277 = vsel %vm208, 0.0, %v244
    %v278 = vsel %vm208, 0.0, %v246
    %v279 = vsel %vm213, %v275, 0.0
    %v280 = vsel %vm213, %v276, 0.0
    %v281 = vsel %vm213, %v277, 0.0
    %v282 = vsel %vm213, %v278, 0.0
    %v283 = vsel %vm218, %v279, %v252
    %v284 = vsel %vm218, %v280, %v254
    %v285 = vsel %vm218, %v281, %v256
    %v286 = vsel %vm218, %v282, %v258
    %v287 = vsel %vm208, 0.0, %v264
    %v288 = vsel %vm208, 0.0, %v266
    %v289 = vsel %vm208, 0.0, %v268
    %v290 = vsel %vm208, 0.0, %v270
    %v291 = vsel %vm213, %v287, 0.0
    %v292 = vsel %vm213, %v288, 0.0
    %v293 = vsel %vm213, %v289, 0.0
    %v294 = vsel %vm213, %v290, 0.0
    %v295 = vsel %vm218, %v291, %v122
    %v296 = vsel %vm218, %v292, %v123
    %v297 = vsel %vm218, %v293, %v124
    %v298 = vsel %vm218, %v294, %v125
    %v300 = vlaneseq
    %v301 = vshrl.u32 %v300, 7
    %v302 = vsub.s32 0, %v301
    %v303 = vrot.slane %v127, %v302
    %304 = vrot.lane.b32.xlu0 %v303, 32
    %v305 = vpop.permute.xlu0 %304
    %v308 = vlaneseq
    %v309 = vshrl.u32 %v308, 7
    %v310 = vsub.s32 0, %v309
    %v311 = vrot.slane %v126, %v310
    %312 = vrot.lane.b32.xlu0 %v311, 32
    %v313 = vpop.permute.xlu0 %312
    %315 = vrot.lane.b32.xlu0 %v303, 64
    %v316 = vpop.permute.xlu0 %315
    %318 = vrot.lane.b32.xlu0 %v311, 64
    %v319 = vpop.permute.xlu0 %318
    %321 = vrot.lane.b32.xlu0 %v303, 96
    %v322 = vpop.permute.xlu0 %321
    %324 = vrot.lane.b32.xlu0 %v311, 96
    %v325 = vpop.permute.xlu0 %324
    %v327 = vsel %vm208, %v126, %v305
    %v328 = vsel %vm213, %v327, %v313
    %v329 = vsel %vm218, %v328, %v316
    %v330 = vsel %vm208, %v319, %v322
    %v331 = vsel %vm213, %v330, %v325
    %v332 = vsel %vm218, %v331, %v127
    %v333 = vld [vmem:[#allocation2] sm:$0x3]
    %v334 = vlaneseq
    %v335 = vand.u32 %v334, 127
    %336 = vset.pattern.permute.xlu0 0
    %337 = vperm.xlu0 %336, %v333
    %v338 = vpop.permute.xlu0 %337
    %vm339 = vcmp.eq.s32.totalorder %v338, %v335
    %v340 = vsel %vm339, 1, 0
    %v341 = vcvt.s32.f32 %v340
    %342 = vset.pattern.permute.xlu0 1
    %343 = vperm.xlu0 %342, %v333
    %v344 = vpop.permute.xlu0 %343
    %vm345 = vcmp.eq.s32.totalorder %v344, %v335
    %v346 = vsel %vm345, 1, 0
    %v347 = vcvt.s32.f32 %v346
    %348 = vset.pattern.permute.xlu0 2
    %349 = vperm.xlu0 %348, %v333
    %v350 = vpop.permute.xlu0 %349
    %vm351 = vcmp.eq.s32.totalorder %v350, %v335
    %v352 = vsel %vm351, 1, 0
    %v353 = vcvt.s32.f32 %v352
    %354 = vset.pattern.permute.xlu0 3
    %355 = vperm.xlu0 %354, %v333
    %v356 = vpop.permute.xlu0 %355
    %vm357 = vcmp.eq.s32.totalorder %v356, %v335
    %v358 = vsel %vm357, 1, 0
    %v359 = vcvt.s32.f32 %v358
    %360 = vset.pattern.permute.xlu0 4
    %361 = vperm.xlu0 %360, %v333
    %v362 = vpop.permute.xlu0 %361
    %vm363 = vcmp.eq.s32.totalorder %v362, %v335
    %v364 = vsel %vm363, 1, 0
    %v365 = vcvt.s32.f32 %v364
    %366 = vset.pattern.permute.xlu0 5
    %367 = vperm.xlu0 %366, %v333
    %v368 = vpop.permute.xlu0 %367
    %vm369 = vcmp.eq.s32.totalorder %v368, %v335
    %v370 = vsel %vm369, 1, 0
    %v371 = vcvt.s32.f32 %v370
    %372 = vset.pattern.permute.xlu0 6
    %373 = vperm.xlu0 %372, %v333
    %v374 = vpop.permute.xlu0 %373
    %vm375 = vcmp.eq.s32.totalorder %v374, %v335
    %v376 = vsel %vm375, 1, 0
    %v377 = vcvt.s32.f32 %v376
    %378 = vset.pattern.permute.xlu0 7
    %379 = vperm.xlu0 %378, %v333
    %v380 = vpop.permute.xlu0 %379
    %vm381 = vcmp.eq.s32.totalorder %v380, %v335
    %v382 = vsel %vm381, 1, 0
    %v383 = vcvt.s32.f32 %v382
    %v385 = vrot.slane %v347, 6
    %v388 = vrot.slane %v353, 4
    %v391 = vrot.slane %v359, 2
    %v394 = vrot.slane %v371, 6
    %v397 = vrot.slane %v377, 4
    %v400 = vrot.slane %v383, 2
    %vm402 = vcmask 1041408
    %v403 = vsel %vm402, %v341, %v385
    %vm404 = vcmask 1043456
    %v405 = vsel %vm404, %v403, %v388
    %vm406 = vcmask 1045504
    %v407 = vsel %vm406, %v405, %v391
    %v408 = vsel %vm402, %v365, %v394
    %v409 = vsel %vm404, %v408, %v397
    %v410 = vsel %vm406, %v409, %v400
    %v411 = vld [vmem:[#allocation5] sm:$0xff]
    %v412 = vld [vmem:[#allocation5 + $0x8] sm:$0xff]
    %v413 = vld [vmem:[#allocation7] sm:$0xff]
    %v414 = vld [vmem:[#allocation7 + $0x8] sm:$0xff]
    %vm415 = vcmask 130048
    %v417 = vsel %vm415, %v411, 0
    %v420 = vsel %vm415, %v412, 0
    %422 = vmatprep.subr.mxu0 0.0
    %423 = vmatpush1.msra.mxu0 0.0
    %424 = vmatprep.subr.mxu0 0.0
    %425 = vmatpush1.msra.mxu0 0.0
    %426 = vmatprep.subr.mxu0 0.0
    %427 = vmatpush1.msra.mxu0 0.0
    %428 = vmatprep.subr.mxu0 0.0
    %429 = vmatpush1.msra.mxu0 0.0
    %430 = vmatprep.subr.mxu0 0.0
    %431 = vmatpush1.msra.mxu0 0.0
    %432 = vmatprep.subr.mxu0 0.0
    %433 = vmatpush1.msra.mxu0 0.0
    %434 = vmatprep.subr.mxu0 0.0
    %435 = vmatpush1.msra.mxu0 0.0
    %436 = vmatprep.subr.mxu0 0.0
    %437 = vmatpush1.msra.mxu0 0.0
    %438 = vmatprep.subr.mxu0 0.0
    %439 = vmatpush1.msra.mxu0 0.0
    %440 = vmatprep.subr.mxu0 0.0
    %441 = vmatpush1.msra.mxu0 0.0
    %442 = vmatprep.subr.mxu0 0.0
    %443 = vmatpush1.msra.mxu0 0.0
    %444 = vmatprep.subr.mxu0 0.0
    %445 = vmatpush1.msra.mxu0 0.0
    %446 = vmatprep.subr.mxu0 0.0
    %447 = vmatpush1.msra.mxu0 0.0
    %448 = vmatprep.subr.mxu0 0.0
    %449 = vmatpush1.msra.mxu0 0.0
    %450 = vmatprep.subr.mxu0 0.0
    %451 = vmatpush1.msra.mxu0 %v414
    %452 = vmatprep.subr.mxu0 0.0
    %453 = vmatpush1.msra.mxu0 %v413
    %454 = vmatprep.subr.mxu0 0.0
    %455 = vmatpush2.msra.mxu0 0.0
    %456 = vmatprep.subr.mxu0 0.0
    %457 = vmatpush2.msra.mxu0 0.0
    %458 = vmatprep.subr.mxu0 0.0
    %459 = vmatpush2.msra.mxu0 0.0
    %460 = vmatprep.subr.mxu0 0.0
    %461 = vmatpush2.msra.mxu0 0.0
    %462 = vmatprep.subr.mxu0 0.0
    %463 = vmatpush2.msra.mxu0 0.0
    %464 = vmatprep.subr.mxu0 0.0
    %465 = vmatpush2.msra.mxu0 0.0
    %466 = vmatprep.subr.mxu0 0.0
    %467 = vmatpush2.msra.mxu0 0.0
    %468 = vmatprep.subr.mxu0 0.0
    %469 = vmatpush2.msra.mxu0 0.0
    %470 = vmatprep.subr.mxu0 0.0
    %471 = vmatpush2.msra.mxu0 0.0
    %472 = vmatprep.subr.mxu0 0.0
    %473 = vmatpush2.msra.mxu0 0.0
    %474 = vmatprep.subr.mxu0 0.0
    %475 = vmatpush2.msra.mxu0 0.0
    %476 = vmatprep.subr.mxu0 0.0
    %477 = vmatpush2.msra.mxu0 0.0
    %478 = vmatprep.subr.mxu0 0.0
    %479 = vmatpush2.msra.mxu0 0.0
    %480 = vmatprep.subr.mxu0 0.0
    %481 = vmatpush2.msra.mxu0 0.0
    %482 = vmatprep.subr.mxu0 0.0
    %483 = vmatpush2.msra.mxu0 0.0
    %484 = vmatprep.subr.mxu0 0.0
    %485 = vmatpush2.msra.mxu0 0.0
    %486 = vmatprep.mubr.f32.mxu0 0.0
    %487 = vmatmul.mubr.f32.gmra.mxu0 %v417
    %v488 = vpop.f32.mrf.mxu0
    %v489 = vadd.f32 0.0, %v488
    %v490 = vpop.f32.mrf.mxu0
    %491 = vmatprep.mubr.f32.mxu0 0.0
    %492 = vmatmul.mubr.f32.gmra.mxu0 %v420
    %v493 = vpop.f32.mrf.mxu0
    %v494 = vadd.f32 0.0, %v493
    %v495 = vpop.f32.mrf.mxu0
    %496 = vdwg.mxu0
    %499 = vrot.lane.b32.xlu0 %v489, 32
    %v500 = vpop.permute.xlu0 %499
    %501 = vrot.lane.b32.xlu0 %v494, 32
    %v502 = vpop.permute.xlu0 %501
    %505 = vrot.lane.b32.xlu0 %v489, 64
    %v506 = vpop.permute.xlu0 %505
    %507 = vrot.lane.b32.xlu0 %v494, 64
    %v508 = vpop.permute.xlu0 %507
    %511 = vrot.lane.b32.xlu0 %v489, 96
    %v512 = vpop.permute.xlu0 %511
    %513 = vrot.lane.b32.xlu0 %v494, 96
    %v514 = vpop.permute.xlu0 %513
    %v517 = vsel %vm208, %v489, 0.0
    %v518 = vsel %vm208, %v494, 0.0
    %v519 = vsel %vm213, %v517, %v500
    %v520 = vsel %vm213, %v518, %v502
    %v521 = vsel %vm218, %v519, 0.0
    %v522 = vsel %vm218, %v520, 0.0
    %v523 = vsel %vm208, %v506, 0.0
    %v524 = vsel %vm208, %v508, 0.0
    %v525 = vsel %vm213, %v523, %v512
    %v526 = vsel %vm213, %v524, %v514
    %v527 = vsel %vm218, %v525, 0.0
    %v528 = vsel %vm218, %v526, 0.0
    %v529 = vlaneseq
    %v530 = vshrl.u32 %v529, 7
    %v531 = vsub.s32 0, %v530
    %v532 = vrot.slane %v329, %v531
    %v533 = vlaneseq
    %v534 = vshrl.u32 %v533, 7
    %v535 = vsub.s32 0, %v534
    %v536 = vrot.slane %v332, %v535
    %v538 = vsel %vm415, %v407, 0
    %v541 = vsel %vm415, %v410, 0
    %543 = vmatprep.subr.mxu0 0.0
    %544 = vmatpush1.msra.mxu0 0.0
    %545 = vmatprep.subr.mxu0 0.0
    %546 = vmatpush1.msra.mxu0 0.0
    %547 = vmatprep.subr.mxu0 0.0
    %548 = vmatpush1.msra.mxu0 0.0
    %549 = vmatprep.subr.mxu0 0.0
    %550 = vmatpush1.msra.mxu0 0.0
    %551 = vmatprep.subr.mxu0 0.0
    %552 = vmatpush1.msra.mxu0 0.0
    %553 = vmatprep.subr.mxu0 0.0
    %554 = vmatpush1.msra.mxu0 0.0
    %555 = vmatprep.subr.mxu0 0.0
    %556 = vmatpush1.msra.mxu0 0.0
    %557 = vmatprep.subr.mxu0 0.0
    %558 = vmatpush1.msra.mxu0 0.0
    %559 = vmatprep.subr.mxu0 0.0
    %560 = vmatpush1.msra.mxu0 0.0
    %561 = vmatprep.subr.mxu0 0.0
    %562 = vmatpush1.msra.mxu0 0.0
    %563 = vmatprep.subr.mxu0 0.0
    %564 = vmatpush1.msra.mxu0 0.0
    %565 = vmatprep.subr.mxu0 0.0
    %566 = vmatpush1.msra.mxu0 0.0
    %567 = vmatprep.subr.mxu0 0.0
    %568 = vmatpush1.msra.mxu0 0.0
    %569 = vmatprep.subr.mxu0 0.0
    %570 = vmatpush1.msra.mxu0 0.0
    %571 = vmatprep.subr.mxu0 %v528
    %572 = vmatpush1.msra.mxu0 %v522
    %573 = vmatprep.subr.mxu0 %v527
    %574 = vmatpush1.msra.mxu0 %v521
    %575 = vmatprep.subr.mxu0 0.0
    %576 = vmatpush2.msra.mxu0 0.0
    %577 = vmatprep.subr.mxu0 0.0
    %578 = vmatpush2.msra.mxu0 0.0
    %579 = vmatprep.subr.mxu0 0.0
    %580 = vmatpush2.msra.mxu0 0.0
    %581 = vmatprep.subr.mxu0 0.0
    %582 = vmatpush2.msra.mxu0 0.0
    %583 = vmatprep.subr.mxu0 0.0
    %584 = vmatpush2.msra.mxu0 0.0
    %585 = vmatprep.subr.mxu0 0.0
    %586 = vmatpush2.msra.mxu0 0.0
    %587 = vmatprep.subr.mxu0 0.0
    %588 = vmatpush2.msra.mxu0 0.0
    %589 = vmatprep.subr.mxu0 0.0
    %590 = vmatpush2.msra.mxu0 0.0
    %591 = vmatprep.subr.mxu0 0.0
    %592 = vmatpush2.msra.mxu0 0.0
    %593 = vmatprep.subr.mxu0 0.0
    %594 = vmatpush2.msra.mxu0 0.0
    %595 = vmatprep.subr.mxu0 0.0
    %596 = vmatpush2.msra.mxu0 0.0
    %597 = vmatprep.subr.mxu0 0.0
    %598 = vmatpush2.msra.mxu0 0.0
    %599 = vmatprep.subr.mxu0 0.0
    %600 = vmatpush2.msra.mxu0 0.0
    %601 = vmatprep.subr.mxu0 0.0
    %602 = vmatpush2.msra.mxu0 0.0
    %603 = vmatprep.subr.mxu0 0.0
    %604 = vmatpush2.msra.mxu0 0.0
    %605 = vmatprep.subr.mxu0 0.0
    %606 = vmatpush2.msra.mxu0 0.0
    %607 = vmatprep.mubr.f32.mxu0 0.0
    %608 = vmatmul.mubr.f32.gmra.mxu0 %v538
    %v609 = vpop.f32.mrf.mxu0
    %v610 = vadd.f32 %v532, %v609
    %v611 = vpop.f32.mrf.mxu0
    %v612 = vadd.f32 %v536, %v611
    %613 = vmatprep.mubr.f32.mxu0 0.0
    %614 = vmatmul.mubr.f32.gmra.mxu0 %v541
    %v615 = vpop.f32.mrf.mxu0
    %v616 = vadd.f32 %v532, %v615
    %v617 = vpop.f32.mrf.mxu0
    %v618 = vadd.f32 %v536, %v617
    %619 = vdwg.mxu0
    %vm620 = vcmp.lt.s32.totalorder %v335, 32
    %v622 = vsel %vm213, 0.0, 0
    %624 = vmatprep.subr.mxu0 0.0
    %625 = vmatpush1.msra.mxu0 0.0
    %626 = vmatprep.subr.mxu0 0.0
    %627 = vmatpush1.msra.mxu0 0.0
    %628 = vmatprep.subr.mxu0 0.0
    %629 = vmatpush1.msra.mxu0 0.0
    %630 = vmatprep.subr.mxu0 0.0
    %631 = vmatpush1.msra.mxu0 0.0
    %632 = vmatprep.subr.mxu0 0.0
    %633 = vmatpush1.msra.mxu0 0.0
    %634 = vmatprep.subr.mxu0 0.0
    %635 = vmatpush1.msra.mxu0 0.0
    %636 = vmatprep.subr.mxu0 0.0
    %637 = vmatpush1.msra.mxu0 0.0
    %638 = vmatprep.subr.mxu0 0.0
    %639 = vmatpush1.msra.mxu0 0.0
    %640 = vmatprep.subr.mxu0 %v298
    %641 = vmatpush1.msra.mxu0 %v286
    %642 = vmatprep.subr.mxu0 %v297
    %643 = vmatpush1.msra.mxu0 %v285
    %644 = vmatprep.subr.mxu0 %v296
    %645 = vmatpush1.msra.mxu0 %v284
    %646 = vmatprep.subr.mxu0 %v295
    %647 = vmatpush1.msra.mxu0 %v283
    %648 = vmatprep.subr.mxu0 %v234
    %649 = vmatpush1.msra.mxu0 %v222
    %650 = vmatprep.subr.mxu0 %v233
    %651 = vmatpush1.msra.mxu0 %v221
    %652 = vmatprep.subr.mxu0 %v232
    %653 = vmatpush1.msra.mxu0 %v220
    %654 = vmatprep.subr.mxu0 %v231
    %655 = vmatpush1.msra.mxu0 %v219
    %656 = vmatprep.subr.mxu0 0.0
    %657 = vmatpush2.msra.mxu0 0.0
    %658 = vmatprep.subr.mxu0 0.0
    %659 = vmatpush2.msra.mxu0 0.0
    %660 = vmatprep.subr.mxu0 0.0
    %661 = vmatpush2.msra.mxu0 0.0
    %662 = vmatprep.subr.mxu0 0.0
    %663 = vmatpush2.msra.mxu0 0.0
    %664 = vmatprep.subr.mxu0 0.0
    %665 = vmatpush2.msra.mxu0 0.0
    %666 = vmatprep.subr.mxu0 0.0
    %667 = vmatpush2.msra.mxu0 0.0
    %668 = vmatprep.subr.mxu0 0.0
    %669 = vmatpush2.msra.mxu0 0.0
    %670 = vmatprep.subr.mxu0 0.0
    %671 = vmatpush2.msra.mxu0 0.0
    %672 = vmatprep.subr.mxu0 0.0
    %673 = vmatpush2.msra.mxu0 0.0
    %674 = vmatprep.subr.mxu0 0.0
    %675 = vmatpush2.msra.mxu0 0.0
    %676 = vmatprep.subr.mxu0 0.0
    %677 = vmatpush2.msra.mxu0 0.0
    %678 = vmatprep.subr.mxu0 0.0
    %679 = vmatpush2.msra.mxu0 0.0
    %680 = vmatprep.subr.mxu0 0.0
    %681 = vmatpush2.msra.mxu0 0.0
    %682 = vmatprep.subr.mxu0 0.0
    %683 = vmatpush2.msra.mxu0 0.0
    %684 = vmatprep.subr.mxu0 0.0
    %685 = vmatpush2.msra.mxu0 0.0
    %686 = vmatprep.subr.mxu0 0.0
    %687 = vmatpush2.msra.mxu0 0.0
    %688 = vmatprep.mubr.f32.mxu0 0.0
    %689 = vmatmul.mubr.f32.gmra.mxu0 %v622
    %v690 = vpop.f32.mrf.mxu0
    %v691 = vadd.f32 %v610, %v690
    %v692 = vpop.f32.mrf.mxu0
    %v693 = vadd.f32 %v612, %v692
    %694 = vdwg.mxu0
    %v695 = vxor.u32 %v691, 2147483648
    %v696 = vxor.u32 %v693, 2147483648
    %v697 = vmul.f32 %v695, 1.442695
    %v698 = vpow.pop %v697
    %v699 = vmul.f32 %v696, 1.442695
    %v700 = vpow.pop %v699
    %v701 = vadd.f32 %v698, 1.0
    %v702 = vadd.f32 %v700, 1.0
    %v703 = vrcp.pop %v701
    %v704 = vmul.f32 1.0, %v703
    %v705 = vrcp.pop %v702
    %v706 = vmul.f32 1.0, %v705
    %v707 = vtanh.pop %v693
    %v708 = vmul.f32 %v704, 0.0
    %v709 = vmul.f32 %v704, %v707
    %711 = vrot.lane.b32.xlu0 %v709, 64
    %v712 = vpop.permute.xlu0 %711
    %v714 = vadd.f32 %v708, %v712
    %v715 = vtanh.pop %v714
    %v716 = vmul.f32 %v706, %v715
    %718 = vrot.lane.b32.xlu0 %v716, 64
    %v719 = vpop.permute.xlu0 %718
    %v721 = vsel %vm620, %v719, 0.0
    %723 = vrot.lane.b32.xlu0 %v714, 64
    %v724 = vpop.permute.xlu0 %723
    %v726 = vsel %vm620, %v724, 0.0
    %v729 = vrot.slane %v610, 2
    %v730 = vrot.slane %v612, 2
    %v734 = vsel %vm213, %v721, 0
    %736 = vmatprep.subr.mxu0 0.0
    %737 = vmatpush1.msra.mxu0 0.0
    %738 = vmatprep.subr.mxu0 0.0
    %739 = vmatpush1.msra.mxu0 0.0
    %740 = vmatprep.subr.mxu0 0.0
    %741 = vmatpush1.msra.mxu0 0.0
    %742 = vmatprep.subr.mxu0 0.0
    %743 = vmatpush1.msra.mxu0 0.0
    %744 = vmatprep.subr.mxu0 0.0
    %745 = vmatpush1.msra.mxu0 0.0
    %746 = vmatprep.subr.mxu0 0.0
    %747 = vmatpush1.msra.mxu0 0.0
    %748 = vmatprep.subr.mxu0 0.0
    %749 = vmatpush1.msra.mxu0 0.0
    %750 = vmatprep.subr.mxu0 0.0
    %751 = vmatpush1.msra.mxu0 0.0
    %752 = vmatprep.subr.mxu0 %v298
    %753 = vmatpush1.msra.mxu0 %v286
    %754 = vmatprep.subr.mxu0 %v297
    %755 = vmatpush1.msra.mxu0 %v285
    %756 = vmatprep.subr.mxu0 %v296
    %757 = vmatpush1.msra.mxu0 %v284
    %758 = vmatprep.subr.mxu0 %v295
    %759 = vmatpush1.msra.mxu0 %v283
    %760 = vmatprep.subr.mxu0 %v234
    %761 = vmatpush1.msra.mxu0 %v222
    %762 = vmatprep.subr.mxu0 %v233
    %763 = vmatpush1.msra.mxu0 %v221
    %764 = vmatprep.subr.mxu0 %v232
    %765 = vmatpush1.msra.mxu0 %v220
    %766 = vmatprep.subr.mxu0 %v231
    %767 = vmatpush1.msra.mxu0 %v219
    %768 = vmatprep.subr.mxu0 0.0
    %769 = vmatpush2.msra.mxu0 0.0
    %770 = vmatprep.subr.mxu0 0.0
    %771 = vmatpush2.msra.mxu0 0.0
    %772 = vmatprep.subr.mxu0 0.0
    %773 = vmatpush2.msra.mxu0 0.0
    %774 = vmatprep.subr.mxu0 0.0
    %775 = vmatpush2.msra.mxu0 0.0
    %776 = vmatprep.subr.mxu0 0.0
    %777 = vmatpush2.msra.mxu0 0.0
    %778 = vmatprep.subr.mxu0 0.0
    %779 = vmatpush2.msra.mxu0 0.0
    %780 = vmatprep.subr.mxu0 0.0
    %781 = vmatpush2.msra.mxu0 0.0
    %782 = vmatprep.subr.mxu0 0.0
    %783 = vmatpush2.msra.mxu0 0.0
    %784 = vmatprep.subr.mxu0 0.0
    %785 = vmatpush2.msra.mxu0 0.0
    %786 = vmatprep.subr.mxu0 0.0
    %787 = vmatpush2.msra.mxu0 0.0
    %788 = vmatprep.subr.mxu0 0.0
    %789 = vmatpush2.msra.mxu0 0.0
    %790 = vmatprep.subr.mxu0 0.0
    %791 = vmatpush2.msra.mxu0 0.0
    %792 = vmatprep.subr.mxu0 0.0
    %793 = vmatpush2.msra.mxu0 0.0
    %794 = vmatprep.subr.mxu0 0.0
    %795 = vmatpush2.msra.mxu0 0.0
    %796 = vmatprep.subr.mxu0 0.0
    %797 = vmatpush2.msra.mxu0 0.0
    %798 = vmatprep.subr.mxu0 0.0
    %799 = vmatpush2.msra.mxu0 0.0
    %800 = vmatprep.mubr.f32.mxu0 0.0
    %801 = vmatmul.mubr.f32.gmra.mxu0 %v734
    %v802 = vpop.f32.mrf.mxu0
    %v803 = vadd.f32 %v729, %v802
    %v804 = vpop.f32.mrf.mxu0
    %v805 = vadd.f32 %v730, %v804
    %806 = vdwg.mxu0
    %v807 = vxor.u32 %v803, 2147483648
    %v808 = vxor.u32 %v805, 2147483648
    %v809 = vmul.f32 %v807, 1.442695
    %v810 = vpow.pop %v809
    %v811 = vmul.f32 %v808, 1.442695
    %v812 = vpow.pop %v811
    %v813 = vadd.f32 %v810, 1.0
    %v814 = vadd.f32 %v812, 1.0
    %v815 = vrcp.pop %v813
    %v816 = vmul.f32 1.0, %v815
    %v817 = vrcp.pop %v814
    %v818 = vmul.f32 1.0, %v817
    %v819 = vtanh.pop %v805
    %821 = vrot.lane.b32.xlu0 %v726, 64
    %v822 = vpop.permute.xlu0 %821
    %v824 = vmul.f32 %v816, %v822
    %v825 = vmul.f32 %v816, %v819
    %827 = vrot.lane.b32.xlu0 %v825, 64
    %v828 = vpop.permute.xlu0 %827
    %v830 = vadd.f32 %v824, %v828
    %v831 = vtanh.pop %v830
    %v832 = vmul.f32 %v818, %v831
    %v835 = vunpack.c.l.s4 1983009808
    %v836 = vunpack.c.0.s8 %v835
    %v837 = vlaneseq
    %v838 = vshrl.u32 %v837, 7
    %v839 = vsub.s32 %v836, %v838
    %v840 = vrot.slane %v832, %v839
    %841 = vrot.lane.b32.xlu0 %v840, 32
    %v842 = vpop.permute.xlu0 %841
    %vm844 = vcmask 254976
    %845 = vst.msk [vmem:[%s8] sm:$0x3] %vm844, %v842
    %846 = vrot.lane.b32.xlu0 %v832, 64
    %v847 = vpop.permute.xlu0 %846
    %v848 = vrot.slane %v610, 4
    %v849 = vrot.slane %v612, 4
    %v852 = vsel %vm213, %v847, 0
    %854 = vmatprep.subr.mxu0 0.0
    %855 = vmatpush1.msra.mxu0 0.0
    %856 = vmatprep.subr.mxu0 0.0
    %857 = vmatpush1.msra.mxu0 0.0
    %858 = vmatprep.subr.mxu0 0.0
    %859 = vmatpush1.msra.mxu0 0.0
    %860 = vmatprep.subr.mxu0 0.0
    %861 = vmatpush1.msra.mxu0 0.0
    %862 = vmatprep.subr.mxu0 0.0
    %863 = vmatpush1.msra.mxu0 0.0
    %864 = vmatprep.subr.mxu0 0.0
    %865 = vmatpush1.msra.mxu0 0.0
    %866 = vmatprep.subr.mxu0 0.0
    %867 = vmatpush1.msra.mxu0 0.0
    %868 = vmatprep.subr.mxu0 0.0
    %869 = vmatpush1.msra.mxu0 0.0
    %870 = vmatprep.subr.mxu0 %v298
    %871 = vmatpush1.msra.mxu0 %v286
    %872 = vmatprep.subr.mxu0 %v297
    %873 = vmatpush1.msra.mxu0 %v285
    %874 = vmatprep.subr.mxu0 %v296
    %875 = vmatpush1.msra.mxu0 %v284
    %876 = vmatprep.subr.mxu0 %v295
    %877 = vmatpush1.msra.mxu0 %v283
    %878 = vmatprep.subr.mxu0 %v234
    %879 = vmatpush1.msra.mxu0 %v222
    %880 = vmatprep.subr.mxu0 %v233
    %881 = vmatpush1.msra.mxu0 %v221
    %882 = vmatprep.subr.mxu0 %v232
    %883 = vmatpush1.msra.mxu0 %v220
    %884 = vmatprep.subr.mxu0 %v231
    %885 = vmatpush1.msra.mxu0 %v219
    %886 = vmatprep.subr.mxu0 0.0
    %887 = vmatpush2.msra.mxu0 0.0
    %888 = vmatprep.subr.mxu0 0.0
    %889 = vmatpush2.msra.mxu0 0.0
    %890 = vmatprep.subr.mxu0 0.0
    %891 = vmatpush2.msra.mxu0 0.0
    %892 = vmatprep.subr.mxu0 0.0
    %893 = vmatpush2.msra.mxu0 0.0
    %894 = vmatprep.subr.mxu0 0.0
    %895 = vmatpush2.msra.mxu0 0.0
    %896 = vmatprep.subr.mxu0 0.0
    %897 = vmatpush2.msra.mxu0 0.0
    %898 = vmatprep.subr.mxu0 0.0
    %899 = vmatpush2.msra.mxu0 0.0
    %900 = vmatprep.subr.mxu0 0.0
    %901 = vmatpush2.msra.mxu0 0.0
    %902 = vmatprep.subr.mxu0 0.0
    %903 = vmatpush2.msra.mxu0 0.0
    %904 = vmatprep.subr.mxu0 0.0
    %905 = vmatpush2.msra.mxu0 0.0
    %906 = vmatprep.subr.mxu0 0.0
    %907 = vmatpush2.msra.mxu0 0.0
    %908 = vmatprep.subr.mxu0 0.0
    %909 = vmatpush2.msra.mxu0 0.0
    %910 = vmatprep.subr.mxu0 0.0
    %911 = vmatpush2.msra.mxu0 0.0
    %912 = vmatprep.subr.mxu0 0.0
    %913 = vmatpush2.msra.mxu0 0.0
    %914 = vmatprep.subr.mxu0 0.0
    %915 = vmatpush2.msra.mxu0 0.0
    %916 = vmatprep.subr.mxu0 0.0
    %917 = vmatpush2.msra.mxu0 0.0
    %918 = vmatprep.mubr.f32.mxu0 0.0
    %919 = vmatmul.mubr.f32.gmra.mxu0 %v852
    %v920 = vpop.f32.mrf.mxu0
    %v921 = vadd.f32 %v848, %v920
    %v922 = vpop.f32.mrf.mxu0
    %v923 = vadd.f32 %v849, %v922
    %924 = vdwg.mxu0
    %v925 = vxor.u32 %v921, 2147483648
    %v926 = vxor.u32 %v923, 2147483648
    %v927 = vmul.f32 %v925, 1.442695
    %v928 = vpow.pop %v927
    %v929 = vmul.f32 %v926, 1.442695
    %v930 = vpow.pop %v929
    %v931 = vadd.f32 %v928, 1.0
    %v932 = vadd.f32 %v930, 1.0
    %v933 = vrcp.pop %v931
    %v934 = vmul.f32 1.0, %v933
    %v935 = vrcp.pop %v932
    %v936 = vmul.f32 1.0, %v935
    %v937 = vtanh.pop %v923
    %v938 = vmul.f32 %v934, %v830
    %v939 = vmul.f32 %v934, %v937
    %941 = vrot.lane.b32.xlu0 %v939, 64
    %v942 = vpop.permute.xlu0 %941
    %v944 = vadd.f32 %v938, %v942
    %v945 = vtanh.pop %v944
    %v946 = vmul.f32 %v936, %v945
    %v949 = vunpack.c.l.s4 1983009808
    %v950 = vunpack.c.0.s8 %v949
    %v951 = vlaneseq
    %v952 = vshrl.u32 %v951, 7
    %v953 = vsub.s32 %v950, %v952
    %v954 = vrot.slane %v946, %v953
    %955 = vrot.lane.b32.xlu0 %v954, 64
    %v956 = vpop.permute.xlu0 %955
    %vm958 = vcmask 517376
    %959 = vst.msk [vmem:[%s8] sm:$0x3] %vm958, %v956
    %960 = vrot.lane.b32.xlu0 %v946, 64
    %v961 = vpop.permute.xlu0 %960
    %v962 = vrot.slane %v610, 6
    %v963 = vrot.slane %v612, 6
    %v966 = vsel %vm213, %v961, 0
    %968 = vmatprep.subr.mxu0 0.0
    %969 = vmatpush1.msra.mxu0 0.0
    %970 = vmatprep.subr.mxu0 0.0
    %971 = vmatpush1.msra.mxu0 0.0
    %972 = vmatprep.subr.mxu0 0.0
    %973 = vmatpush1.msra.mxu0 0.0
    %974 = vmatprep.subr.mxu0 0.0
    %975 = vmatpush1.msra.mxu0 0.0
    %976 = vmatprep.subr.mxu0 0.0
    %977 = vmatpush1.msra.mxu0 0.0
    %978 = vmatprep.subr.mxu0 0.0
    %979 = vmatpush1.msra.mxu0 0.0
    %980 = vmatprep.subr.mxu0 0.0
    %981 = vmatpush1.msra.mxu0 0.0
    %982 = vmatprep.subr.mxu0 0.0
    %983 = vmatpush1.msra.mxu0 0.0
    %984 = vmatprep.subr.mxu0 %v298
    %985 = vmatpush1.msra.mxu0 %v286
    %986 = vmatprep.subr.mxu0 %v297
    %987 = vmatpush1.msra.mxu0 %v285
    %988 = vmatprep.subr.mxu0 %v296
    %989 = vmatpush1.msra.mxu0 %v284
    %990 = vmatprep.subr.mxu0 %v295
    %991 = vmatpush1.msra.mxu0 %v283
    %992 = vmatprep.subr.mxu0 %v234
    %993 = vmatpush1.msra.mxu0 %v222
    %994 = vmatprep.subr.mxu0 %v233
    %995 = vmatpush1.msra.mxu0 %v221
    %996 = vmatprep.subr.mxu0 %v232
    %997 = vmatpush1.msra.mxu0 %v220
    %998 = vmatprep.subr.mxu0 %v231
    %999 = vmatpush1.msra.mxu0 %v219
    %1000 = vmatprep.subr.mxu0 0.0
    %1001 = vmatpush2.msra.mxu0 0.0
    %1002 = vmatprep.subr.mxu0 0.0
    %1003 = vmatpush2.msra.mxu0 0.0
    %1004 = vmatprep.subr.mxu0 0.0
    %1005 = vmatpush2.msra.mxu0 0.0
    %1006 = vmatprep.subr.mxu0 0.0
    %1007 = vmatpush2.msra.mxu0 0.0
    %1008 = vmatprep.subr.mxu0 0.0
    %1009 = vmatpush2.msra.mxu0 0.0
    %1010 = vmatprep.subr.mxu0 0.0
    %1011 = vmatpush2.msra.mxu0 0.0
    %1012 = vmatprep.subr.mxu0 0.0
    %1013 = vmatpush2.msra.mxu0 0.0
    %1014 = vmatprep.subr.mxu0 0.0
    %1015 = vmatpush2.msra.mxu0 0.0
    %1016 = vmatprep.subr.mxu0 0.0
    %1017 = vmatpush2.msra.mxu0 0.0
    %1018 = vmatprep.subr.mxu0 0.0
    %1019 = vmatpush2.msra.mxu0 0.0
    %1020 = vmatprep.subr.mxu0 0.0
    %1021 = vmatpush2.msra.mxu0 0.0
    %1022 = vmatprep.subr.mxu0 0.0
    %1023 = vmatpush2.msra.mxu0 0.0
    %1024 = vmatprep.subr.mxu0 0.0
    %1025 = vmatpush2.msra.mxu0 0.0
    %1026 = vmatprep.subr.mxu0 0.0
    %1027 = vmatpush2.msra.mxu0 0.0
    %1028 = vmatprep.subr.mxu0 0.0
    %1029 = vmatpush2.msra.mxu0 0.0
    %1030 = vmatprep.subr.mxu0 0.0
    %1031 = vmatpush2.msra.mxu0 0.0
    %1032 = vmatprep.mubr.f32.mxu0 0.0
    %1033 = vmatmul.mubr.f32.gmra.mxu0 %v966
    %v1034 = vpop.f32.mrf.mxu0
    %v1035 = vadd.f32 %v962, %v1034
    %v1036 = vpop.f32.mrf.mxu0
    %v1037 = vadd.f32 %v963, %v1036
    %1038 = vdwg.mxu0
    %v1039 = vxor.u32 %v1035, 2147483648
    %v1040 = vxor.u32 %v1037, 2147483648
    %v1041 = vmul.f32 %v1039, 1.442695
    %v1042 = vpow.pop %v1041
    %v1043 = vmul.f32 %v1040, 1.442695
    %v1044 = vpow.pop %v1043
    %v1045 = vadd.f32 %v1042, 1.0
    %v1046 = vadd.f32 %v1044, 1.0
    %v1047 = vrcp.pop %v1045
    %v1048 = vmul.f32 1.0, %v1047
    %v1049 = vrcp.pop %v1046
    %v1050 = vmul.f32 1.0, %v1049
    %v1051 = vtanh.pop %v1037
    %v1052 = vmul.f32 %v1048, %v944
    %v1053 = vmul.f32 %v1048, %v1051
    %1055 = vrot.lane.b32.xlu0 %v1053, 64
    %v1056 = vpop.permute.xlu0 %1055
    %v1058 = vadd.f32 %v1052, %v1056
    %v1059 = vtanh.pop %v1058
    %v1060 = vmul.f32 %v1050, %v1059
    %v1063 = vunpack.c.l.s4 1983009808
    %v1064 = vunpack.c.0.s8 %v1063
    %v1065 = vlaneseq
    %v1066 = vshrl.u32 %v1065, 7
    %v1067 = vsub.s32 %v1064, %v1066
    %v1068 = vrot.slane %v1060, %v1067
    %1069 = vrot.lane.b32.xlu0 %v1068, 96
    %v1070 = vpop.permute.xlu0 %1069
    %vm1072 = vcmask 779776
    %1073 = vst.msk [vmem:[%s8] sm:$0x3] %vm1072, %v1070
    %1074 = vrot.lane.b32.xlu0 %v1060, 64
    %v1075 = vpop.permute.xlu0 %1074
    %v1076 = vsel %vm213, %v1075, 0
    %1078 = vmatprep.subr.mxu0 0.0
    %1079 = vmatpush1.msra.mxu0 0.0
    %1080 = vmatprep.subr.mxu0 0.0
    %1081 = vmatpush1.msra.mxu0 0.0
    %1082 = vmatprep.subr.mxu0 0.0
    %1083 = vmatpush1.msra.mxu0 0.0
    %1084 = vmatprep.subr.mxu0 0.0
    %1085 = vmatpush1.msra.mxu0 0.0
    %1086 = vmatprep.subr.mxu0 0.0
    %1087 = vmatpush1.msra.mxu0 0.0
    %1088 = vmatprep.subr.mxu0 0.0
    %1089 = vmatpush1.msra.mxu0 0.0
    %1090 = vmatprep.subr.mxu0 0.0
    %1091 = vmatpush1.msra.mxu0 0.0
    %1092 = vmatprep.subr.mxu0 0.0
    %1093 = vmatpush1.msra.mxu0 0.0
    %1094 = vmatprep.subr.mxu0 %v298
    %1095 = vmatpush1.msra.mxu0 %v286
    %1096 = vmatprep.subr.mxu0 %v297
    %1097 = vmatpush1.msra.mxu0 %v285
    %1098 = vmatprep.subr.mxu0 %v296
    %1099 = vmatpush1.msra.mxu0 %v284
    %1100 = vmatprep.subr.mxu0 %v295
    %1101 = vmatpush1.msra.mxu0 %v283
    %1102 = vmatprep.subr.mxu0 %v234
    %1103 = vmatpush1.msra.mxu0 %v222
    %1104 = vmatprep.subr.mxu0 %v233
    %1105 = vmatpush1.msra.mxu0 %v221
    %1106 = vmatprep.subr.mxu0 %v232
    %1107 = vmatpush1.msra.mxu0 %v220
    %1108 = vmatprep.subr.mxu0 %v231
    %1109 = vmatpush1.msra.mxu0 %v219
    %1110 = vmatprep.subr.mxu0 0.0
    %1111 = vmatpush2.msra.mxu0 0.0
    %1112 = vmatprep.subr.mxu0 0.0
    %1113 = vmatpush2.msra.mxu0 0.0
    %1114 = vmatprep.subr.mxu0 0.0
    %1115 = vmatpush2.msra.mxu0 0.0
    %1116 = vmatprep.subr.mxu0 0.0
    %1117 = vmatpush2.msra.mxu0 0.0
    %1118 = vmatprep.subr.mxu0 0.0
    %1119 = vmatpush2.msra.mxu0 0.0
    %1120 = vmatprep.subr.mxu0 0.0
    %1121 = vmatpush2.msra.mxu0 0.0
    %1122 = vmatprep.subr.mxu0 0.0
    %1123 = vmatpush2.msra.mxu0 0.0
    %1124 = vmatprep.subr.mxu0 0.0
    %1125 = vmatpush2.msra.mxu0 0.0
    %1126 = vmatprep.subr.mxu0 0.0
    %1127 = vmatpush2.msra.mxu0 0.0
    %1128 = vmatprep.subr.mxu0 0.0
    %1129 = vmatpush2.msra.mxu0 0.0
    %1130 = vmatprep.subr.mxu0 0.0
    %1131 = vmatpush2.msra.mxu0 0.0
    %1132 = vmatprep.subr.mxu0 0.0
    %1133 = vmatpush2.msra.mxu0 0.0
    %1134 = vmatprep.subr.mxu0 0.0
    %1135 = vmatpush2.msra.mxu0 0.0
    %1136 = vmatprep.subr.mxu0 0.0
    %1137 = vmatpush2.msra.mxu0 0.0
    %1138 = vmatprep.subr.mxu0 0.0
    %1139 = vmatpush2.msra.mxu0 0.0
    %1140 = vmatprep.subr.mxu0 0.0
    %1141 = vmatpush2.msra.mxu0 0.0
    %1142 = vmatprep.mubr.f32.mxu0 0.0
    %1143 = vmatmul.mubr.f32.gmra.mxu0 %v1076
    %v1144 = vpop.f32.mrf.mxu0
    %v1145 = vadd.f32 %v616, %v1144
    %v1146 = vpop.f32.mrf.mxu0
    %v1147 = vadd.f32 %v618, %v1146
    %1148 = vdwg.mxu0
    %v1149 = vxor.u32 %v1145, 2147483648
    %v1150 = vxor.u32 %v1147, 2147483648
    %v1151 = vmul.f32 %v1149, 1.442695
    %v1152 = vpow.pop %v1151
    %v1153 = vmul.f32 %v1150, 1.442695
    %v1154 = vpow.pop %v1153
    %v1155 = vadd.f32 %v1152, 1.0
    %v1156 = vadd.f32 %v1154, 1.0
    %v1157 = vrcp.pop %v1155
    %v1158 = vmul.f32 1.0, %v1157
    %v1159 = vrcp.pop %v1156
    %v1160 = vmul.f32 1.0, %v1159
    %v1161 = vtanh.pop %v1147
    %v1162 = vmul.f32 %v1158, %v1058
    %v1163 = vmul.f32 %v1158, %v1161
    %1165 = vrot.lane.b32.xlu0 %v1163, 64
    %v1166 = vpop.permute.xlu0 %1165
    %v1168 = vadd.f32 %v1162, %v1166
    %v1169 = vtanh.pop %v1168
    %v1170 = vmul.f32 %v1160, %v1169
    %vm1171 = vcmask 1042176
    %1172 = vst.msk [vmem:[%s8] sm:$0x3] %vm1171, %v1170
    %1174 = vrot.lane.b32.xlu0 %v1170, 64
    %v1175 = vpop.permute.xlu0 %1174
    %v1178 = vrot.slane %v616, 2
    %v1179 = vrot.slane %v618, 2
    %v1182 = vsel %vm213, %v1175, 0
    %1184 = vmatprep.subr.mxu0 0.0
    %1185 = vmatpush1.msra.mxu0 0.0
    %1186 = vmatprep.subr.mxu0 0.0
    %1187 = vmatpush1.msra.mxu0 0.0
    %1188 = vmatprep.subr.mxu0 0.0
    %1189 = vmatpush1.msra.mxu0 0.0
    %1190 = vmatprep.subr.mxu0 0.0
    %1191 = vmatpush1.msra.mxu0 0.0
    %1192 = vmatprep.subr.mxu0 0.0
    %1193 = vmatpush1.msra.mxu0 0.0
    %1194 = vmatprep.subr.mxu0 0.0
    %1195 = vmatpush1.msra.mxu0 0.0
    %1196 = vmatprep.subr.mxu0 0.0
    %1197 = vmatpush1.msra.mxu0 0.0
    %1198 = vmatprep.subr.mxu0 0.0
    %1199 = vmatpush1.msra.mxu0 0.0
    %1200 = vmatprep.subr.mxu0 %v298
    %1201 = vmatpush1.msra.mxu0 %v286
    %1202 = vmatprep.subr.mxu0 %v297
    %1203 = vmatpush1.msra.mxu0 %v285
    %1204 = vmatprep.subr.mxu0 %v296
    %1205 = vmatpush1.msra.mxu0 %v284
    %1206 = vmatprep.subr.mxu0 %v295
    %1207 = vmatpush1.msra.mxu0 %v283
    %1208 = vmatprep.subr.mxu0 %v234
    %1209 = vmatpush1.msra.mxu0 %v222
    %1210 = vmatprep.subr.mxu0 %v233
    %1211 = vmatpush1.msra.mxu0 %v221
    %1212 = vmatprep.subr.mxu0 %v232
    %1213 = vmatpush1.msra.mxu0 %v220
    %1214 = vmatprep.subr.mxu0 %v231
    %1215 = vmatpush1.msra.mxu0 %v219
    %1216 = vmatprep.subr.mxu0 0.0
    %1217 = vmatpush2.msra.mxu0 0.0
    %1218 = vmatprep.subr.mxu0 0.0
    %1219 = vmatpush2.msra.mxu0 0.0
    %1220 = vmatprep.subr.mxu0 0.0
    %1221 = vmatpush2.msra.mxu0 0.0
    %1222 = vmatprep.subr.mxu0 0.0
    %1223 = vmatpush2.msra.mxu0 0.0
    %1224 = vmatprep.subr.mxu0 0.0
    %1225 = vmatpush2.msra.mxu0 0.0
    %1226 = vmatprep.subr.mxu0 0.0
    %1227 = vmatpush2.msra.mxu0 0.0
    %1228 = vmatprep.subr.mxu0 0.0
    %1229 = vmatpush2.msra.mxu0 0.0
    %1230 = vmatprep.subr.mxu0 0.0
    %1231 = vmatpush2.msra.mxu0 0.0
    %1232 = vmatprep.subr.mxu0 0.0
    %1233 = vmatpush2.msra.mxu0 0.0
    %1234 = vmatprep.subr.mxu0 0.0
    %1235 = vmatpush2.msra.mxu0 0.0
    %1236 = vmatprep.subr.mxu0 0.0
    %1237 = vmatpush2.msra.mxu0 0.0
    %1238 = vmatprep.subr.mxu0 0.0
    %1239 = vmatpush2.msra.mxu0 0.0
    %1240 = vmatprep.subr.mxu0 0.0
    %1241 = vmatpush2.msra.mxu0 0.0
    %1242 = vmatprep.subr.mxu0 0.0
    %1243 = vmatpush2.msra.mxu0 0.0
    %1244 = vmatprep.subr.mxu0 0.0
    %1245 = vmatpush2.msra.mxu0 0.0
    %1246 = vmatprep.subr.mxu0 0.0
    %1247 = vmatpush2.msra.mxu0 0.0
    %1248 = vmatprep.mubr.f32.mxu0 0.0
    %1249 = vmatmul.mubr.f32.gmra.mxu0 %v1182
    %v1250 = vpop.f32.mrf.mxu0
    %v1251 = vadd.f32 %v1178, %v1250
    %v1252 = vpop.f32.mrf.mxu0
    %v1253 = vadd.f32 %v1179, %v1252
    %1254 = vdwg.mxu0
    %v1255 = vxor.u32 %v1251, 2147483648
    %v1256 = vxor.u32 %v1253, 2147483648
    %v1257 = vmul.f32 %v1255, 1.442695
    %v1258 = vpow.pop %v1257
    %v1259 = vmul.f32 %v1256, 1.442695
    %v1260 = vpow.pop %v1259
    %v1261 = vadd.f32 %v1258, 1.0
    %v1262 = vadd.f32 %v1260, 1.0
    %v1263 = vrcp.pop %v1261
    %v1264 = vmul.f32 1.0, %v1263
    %v1265 = vrcp.pop %v1262
    %v1266 = vmul.f32 1.0, %v1265
    %v1267 = vtanh.pop %v1253
    %v1268 = vmul.f32 %v1264, %v1168
    %v1269 = vmul.f32 %v1264, %v1267
    %1271 = vrot.lane.b32.xlu0 %v1269, 64
    %v1272 = vpop.permute.xlu0 %1271
    %v1274 = vadd.f32 %v1268, %v1272
    %v1275 = vtanh.pop %v1274
    %v1276 = vmul.f32 %v1266, %v1275
    %v1279 = vunpack.c.l.s4 1983009808
    %v1280 = vunpack.c.0.s8 %v1279
    %v1281 = vlaneseq
    %v1282 = vshrl.u32 %v1281, 7
    %v1283 = vsub.s32 %v1280, %v1282
    %v1284 = vrot.slane %v1276, %v1283
    %1285 = vrot.lane.b32.xlu0 %v1284, 32
    %v1286 = vpop.permute.xlu0 %1285
    %1288 = vst.msk [vmem:[%s8 + $0x2] sm:$0x3] %vm844, %v1286
    %1289 = vrot.lane.b32.xlu0 %v1276, 64
    %v1290 = vpop.permute.xlu0 %1289
    %v1291 = vrot.slane %v616, 4
    %v1292 = vrot.slane %v618, 4
    %v1295 = vsel %vm213, %v1290, 0
    %1297 = vmatprep.subr.mxu0 0.0
    %1298 = vmatpush1.msra.mxu0 0.0
    %1299 = vmatprep.subr.mxu0 0.0
    %1300 = vmatpush1.msra.mxu0 0.0
    %1301 = vmatprep.subr.mxu0 0.0
    %1302 = vmatpush1.msra.mxu0 0.0
    %1303 = vmatprep.subr.mxu0 0.0
    %1304 = vmatpush1.msra.mxu0 0.0
    %1305 = vmatprep.subr.mxu0 0.0
    %1306 = vmatpush1.msra.mxu0 0.0
    %1307 = vmatprep.subr.mxu0 0.0
    %1308 = vmatpush1.msra.mxu0 0.0
    %1309 = vmatprep.subr.mxu0 0.0
    %1310 = vmatpush1.msra.mxu0 0.0
    %1311 = vmatprep.subr.mxu0 0.0
    %1312 = vmatpush1.msra.mxu0 0.0
    %1313 = vmatprep.subr.mxu0 %v298
    %1314 = vmatpush1.msra.mxu0 %v286
    %1315 = vmatprep.subr.mxu0 %v297
    %1316 = vmatpush1.msra.mxu0 %v285
    %1317 = vmatprep.subr.mxu0 %v296
    %1318 = vmatpush1.msra.mxu0 %v284
    %1319 = vmatprep.subr.mxu0 %v295
    %1320 = vmatpush1.msra.mxu0 %v283
    %1321 = vmatprep.subr.mxu0 %v234
    %1322 = vmatpush1.msra.mxu0 %v222
    %1323 = vmatprep.subr.mxu0 %v233
    %1324 = vmatpush1.msra.mxu0 %v221
    %1325 = vmatprep.subr.mxu0 %v232
    %1326 = vmatpush1.msra.mxu0 %v220
    %1327 = vmatprep.subr.mxu0 %v231
    %1328 = vmatpush1.msra.mxu0 %v219
    %1329 = vmatprep.subr.mxu0 0.0
    %1330 = vmatpush2.msra.mxu0 0.0
    %1331 = vmatprep.subr.mxu0 0.0
    %1332 = vmatpush2.msra.mxu0 0.0
    %1333 = vmatprep.subr.mxu0 0.0
    %1334 = vmatpush2.msra.mxu0 0.0
    %1335 = vmatprep.subr.mxu0 0.0
    %1336 = vmatpush2.msra.mxu0 0.0
    %1337 = vmatprep.subr.mxu0 0.0
    %1338 = vmatpush2.msra.mxu0 0.0
    %1339 = vmatprep.subr.mxu0 0.0
    %1340 = vmatpush2.msra.mxu0 0.0
    %1341 = vmatprep.subr.mxu0 0.0
    %1342 = vmatpush2.msra.mxu0 0.0
    %1343 = vmatprep.subr.mxu0 0.0
    %1344 = vmatpush2.msra.mxu0 0.0
    %1345 = vmatprep.subr.mxu0 0.0
    %1346 = vmatpush2.msra.mxu0 0.0
    %1347 = vmatprep.subr.mxu0 0.0
    %1348 = vmatpush2.msra.mxu0 0.0
    %1349 = vmatprep.subr.mxu0 0.0
    %1350 = vmatpush2.msra.mxu0 0.0
    %1351 = vmatprep.subr.mxu0 0.0
    %1352 = vmatpush2.msra.mxu0 0.0
    %1353 = vmatprep.subr.mxu0 0.0
    %1354 = vmatpush2.msra.mxu0 0.0
    %1355 = vmatprep.subr.mxu0 0.0
    %1356 = vmatpush2.msra.mxu0 0.0
    %1357 = vmatprep.subr.mxu0 0.0
    %1358 = vmatpush2.msra.mxu0 0.0
    %1359 = vmatprep.subr.mxu0 0.0
    %1360 = vmatpush2.msra.mxu0 0.0
    %1361 = vmatprep.mubr.f32.mxu0 0.0
    %1362 = vmatmul.mubr.f32.gmra.mxu0 %v1295
    %v1363 = vpop.f32.mrf.mxu0
    %v1364 = vadd.f32 %v1291, %v1363
    %v1365 = vpop.f32.mrf.mxu0
    %v1366 = vadd.f32 %v1292, %v1365
    %1367 = vdwg.mxu0
    %v1368 = vxor.u32 %v1364, 2147483648
    %v1369 = vxor.u32 %v1366, 2147483648
    %v1370 = vmul.f32 %v1368, 1.442695
    %v1371 = vpow.pop %v1370
    %v1372 = vmul.f32 %v1369, 1.442695
    %v1373 = vpow.pop %v1372
    %v1374 = vadd.f32 %v1371, 1.0
    %v1375 = vadd.f32 %v1373, 1.0
    %v1376 = vrcp.pop %v1374
    %v1377 = vmul.f32 1.0, %v1376
    %v1378 = vrcp.pop %v1375
    %v1379 = vmul.f32 1.0, %v1378
    %v1380 = vtanh.pop %v1366
    %v1381 = vmul.f32 %v1377, %v1274
    %v1382 = vmul.f32 %v1377, %v1380
    %1384 = vrot.lane.b32.xlu0 %v1382, 64
    %v1385 = vpop.permute.xlu0 %1384
    %v1387 = vadd.f32 %v1381, %v1385
    %v1388 = vtanh.pop %v1387
    %v1389 = vmul.f32 %v1379, %v1388
    %v1392 = vunpack.c.l.s4 1983009808
    %v1393 = vunpack.c.0.s8 %v1392
    %v1394 = vlaneseq
    %v1395 = vshrl.u32 %v1394, 7
    %v1396 = vsub.s32 %v1393, %v1395
    %v1397 = vrot.slane %v1389, %v1396
    %1398 = vrot.lane.b32.xlu0 %v1397, 64
    %v1399 = vpop.permute.xlu0 %1398
    %1401 = vst.msk [vmem:[%s8 + $0x2] sm:$0x3] %vm958, %v1399
    %1402 = vrot.lane.b32.xlu0 %v1389, 64
    %v1403 = vpop.permute.xlu0 %1402
    %v1404 = vrot.slane %v616, 6
    %v1405 = vrot.slane %v618, 6
    %v1408 = vsel %vm213, %v1403, 0
    %1410 = vmatprep.subr.mxu0 0.0
    %1411 = vmatpush1.msra.mxu0 0.0
    %1412 = vmatprep.subr.mxu0 0.0
    %1413 = vmatpush1.msra.mxu0 0.0
    %1414 = vmatprep.subr.mxu0 0.0
    %1415 = vmatpush1.msra.mxu0 0.0
    %1416 = vmatprep.subr.mxu0 0.0
    %1417 = vmatpush1.msra.mxu0 0.0
    %1418 = vmatprep.subr.mxu0 0.0
    %1419 = vmatpush1.msra.mxu0 0.0
    %1420 = vmatprep.subr.mxu0 0.0
    %1421 = vmatpush1.msra.mxu0 0.0
    %1422 = vmatprep.subr.mxu0 0.0
    %1423 = vmatpush1.msra.mxu0 0.0
    %1424 = vmatprep.subr.mxu0 0.0
    %1425 = vmatpush1.msra.mxu0 0.0
    %1426 = vmatprep.subr.mxu0 %v298
    %1427 = vmatpush1.msra.mxu0 %v286
    %1428 = vmatprep.subr.mxu0 %v297
    %1429 = vmatpush1.msra.mxu0 %v285
    %1430 = vmatprep.subr.mxu0 %v296
    %1431 = vmatpush1.msra.mxu0 %v284
    %1432 = vmatprep.subr.mxu0 %v295
    %1433 = vmatpush1.msra.mxu0 %v283
    %1434 = vmatprep.subr.mxu0 %v234
    %1435 = vmatpush1.msra.mxu0 %v222
    %1436 = vmatprep.subr.mxu0 %v233
    %1437 = vmatpush1.msra.mxu0 %v221
    %1438 = vmatprep.subr.mxu0 %v232
    %1439 = vmatpush1.msra.mxu0 %v220
    %1440 = vmatprep.subr.mxu0 %v231
    %1441 = vmatpush1.msra.mxu0 %v219
    %1442 = vmatprep.subr.mxu0 0.0
    %1443 = vmatpush2.msra.mxu0 0.0
    %1444 = vmatprep.subr.mxu0 0.0
    %1445 = vmatpush2.msra.mxu0 0.0
    %1446 = vmatprep.subr.mxu0 0.0
    %1447 = vmatpush2.msra.mxu0 0.0
    %1448 = vmatprep.subr.mxu0 0.0
    %1449 = vmatpush2.msra.mxu0 0.0
    %1450 = vmatprep.subr.mxu0 0.0
    %1451 = vmatpush2.msra.mxu0 0.0
    %1452 = vmatprep.subr.mxu0 0.0
    %1453 = vmatpush2.msra.mxu0 0.0
    %1454 = vmatprep.subr.mxu0 0.0
    %1455 = vmatpush2.msra.mxu0 0.0
    %1456 = vmatprep.subr.mxu0 0.0
    %1457 = vmatpush2.msra.mxu0 0.0
    %1458 = vmatprep.subr.mxu0 0.0
    %1459 = vmatpush2.msra.mxu0 0.0
    %1460 = vmatprep.subr.mxu0 0.0
    %1461 = vmatpush2.msra.mxu0 0.0
    %1462 = vmatprep.subr.mxu0 0.0
    %1463 = vmatpush2.msra.mxu0 0.0
    %1464 = vmatprep.subr.mxu0 0.0
    %1465 = vmatpush2.msra.mxu0 0.0
    %1466 = vmatprep.subr.mxu0 0.0
    %1467 = vmatpush2.msra.mxu0 0.0
    %1468 = vmatprep.subr.mxu0 0.0
    %1469 = vmatpush2.msra.mxu0 0.0
    %1470 = vmatprep.subr.mxu0 0.0
    %1471 = vmatpush2.msra.mxu0 0.0
    %1472 = vmatprep.subr.mxu0 0.0
    %1473 = vmatpush2.msra.mxu0 0.0
    %1474 = vmatprep.mubr.f32.mxu0 0.0
    %1475 = vmatmul.mubr.f32.gmra.mxu0 %v1408
    %v1476 = vpop.f32.mrf.mxu0
    %v1477 = vadd.f32 %v1404, %v1476
    %v1478 = vpop.f32.mrf.mxu0
    %v1479 = vadd.f32 %v1405, %v1478
    %1480 = vdwg.mxu0
    %v1481 = vxor.u32 %v1477, 2147483648
    %v1482 = vxor.u32 %v1479, 2147483648
    %v1483 = vmul.f32 %v1481, 1.442695
    %v1484 = vpow.pop %v1483
    %v1485 = vmul.f32 %v1482, 1.442695
    %v1486 = vpow.pop %v1485
    %v1487 = vadd.f32 %v1484, 1.0
    %v1488 = vadd.f32 %v1486, 1.0
    %v1489 = vrcp.pop %v1487
    %v1490 = vmul.f32 1.0, %v1489
    %v1491 = vrcp.pop %v1488
    %v1492 = vmul.f32 1.0, %v1491
    %v1493 = vtanh.pop %v1479
    %v1494 = vmul.f32 %v1490, %v1387
    %v1495 = vmul.f32 %v1490, %v1493
    %1497 = vrot.lane.b32.xlu0 %v1495, 64
    %v1498 = vpop.permute.xlu0 %1497
    %v1500 = vadd.f32 %v1494, %v1498
    %v1501 = vtanh.pop %v1500
    %v1502 = vmul.f32 %v1492, %v1501
    %v1505 = vunpack.c.l.s4 1983009808
    %v1506 = vunpack.c.0.s8 %v1505
    %v1507 = vlaneseq
    %v1508 = vshrl.u32 %v1507, 7
    %v1509 = vsub.s32 %v1506, %v1508
    %v1510 = vrot.slane %v1502, %v1509
    %1511 = vrot.lane.b32.xlu0 %v1510, 96
    %v1512 = vpop.permute.xlu0 %1511
    %1514 = vst.msk [vmem:[%s8 + $0x2] sm:$0x3] %vm1072, %v1512
    %1515 = vrot.lane.b32.xlu0 %v1502, 64
    %v1516 = vpop.permute.xlu0 %1515
    %v1517 = vsel %vm213, %v1516, 0
    %1519 = vmatprep.subr.mxu0 0.0
    %1520 = vmatpush1.msra.mxu0 0.0
    %1521 = vmatprep.subr.mxu0 0.0
    %1522 = vmatpush1.msra.mxu0 0.0
    %1523 = vmatprep.subr.mxu0 0.0
    %1524 = vmatpush1.msra.mxu0 0.0
    %1525 = vmatprep.subr.mxu0 0.0
    %1526 = vmatpush1.msra.mxu0 0.0
    %1527 = vmatprep.subr.mxu0 0.0
    %1528 = vmatpush1.msra.mxu0 0.0
    %1529 = vmatprep.subr.mxu0 0.0
    %1530 = vmatpush1.msra.mxu0 0.0
    %1531 = vmatprep.subr.mxu0 0.0
    %1532 = vmatpush1.msra.mxu0 0.0
    %1533 = vmatprep.subr.mxu0 0.0
    %1534 = vmatpush1.msra.mxu0 0.0
    %1535 = vmatprep.subr.mxu0 %v298
    %1536 = vmatpush1.msra.mxu0 %v286
    %1537 = vmatprep.subr.mxu0 %v297
    %1538 = vmatpush1.msra.mxu0 %v285
    %1539 = vmatprep.subr.mxu0 %v296
    %1540 = vmatpush1.msra.mxu0 %v284
    %1541 = vmatprep.subr.mxu0 %v295
    %1542 = vmatpush1.msra.mxu0 %v283
    %1543 = vmatprep.subr.mxu0 %v234
    %1544 = vmatpush1.msra.mxu0 %v222
    %1545 = vmatprep.subr.mxu0 %v233
    %1546 = vmatpush1.msra.mxu0 %v221
    %1547 = vmatprep.subr.mxu0 %v232
    %1548 = vmatpush1.msra.mxu0 %v220
    %1549 = vmatprep.subr.mxu0 %v231
    %1550 = vmatpush1.msra.mxu0 %v219
    %1551 = vmatprep.subr.mxu0 0.0
    %1552 = vmatpush2.msra.mxu0 0.0
    %1553 = vmatprep.subr.mxu0 0.0
    %1554 = vmatpush2.msra.mxu0 0.0
    %1555 = vmatprep.subr.mxu0 0.0
    %1556 = vmatpush2.msra.mxu0 0.0
    %1557 = vmatprep.subr.mxu0 0.0
    %1558 = vmatpush2.msra.mxu0 0.0
    %1559 = vmatprep.subr.mxu0 0.0
    %1560 = vmatpush2.msra.mxu0 0.0
    %1561 = vmatprep.subr.mxu0 0.0
    %1562 = vmatpush2.msra.mxu0 0.0
    %1563 = vmatprep.subr.mxu0 0.0
    %1564 = vmatpush2.msra.mxu0 0.0
    %1565 = vmatprep.subr.mxu0 0.0
    %1566 = vmatpush2.msra.mxu0 0.0
    %1567 = vmatprep.subr.mxu0 0.0
    %1568 = vmatpush2.msra.mxu0 0.0
    %1569 = vmatprep.subr.mxu0 0.0
    %1570 = vmatpush2.msra.mxu0 0.0
    %1571 = vmatprep.subr.mxu0 0.0
    %1572 = vmatpush2.msra.mxu0 0.0
    %1573 = vmatprep.subr.mxu0 0.0
    %1574 = vmatpush2.msra.mxu0 0.0
    %1575 = vmatprep.subr.mxu0 0.0
    %1576 = vmatpush2.msra.mxu0 0.0
    %1577 = vmatprep.subr.mxu0 0.0
    %1578 = vmatpush2.msra.mxu0 0.0
    %1579 = vmatprep.subr.mxu0 0.0
    %1580 = vmatpush2.msra.mxu0 0.0
    %1581 = vmatprep.subr.mxu0 0.0
    %1582 = vmatpush2.msra.mxu0 0.0
    %1583 = vmatprep.mubr.f32.mxu0 0.0
    %1584 = vmatmul.mubr.f32.gmra.mxu0 %v1517
    %v1585 = vpop.f32.mrf.mxu0
    %v1586 = vadd.f32 %v532, %v1585
    %v1587 = vpop.f32.mrf.mxu0
    %v1588 = vadd.f32 %v536, %v1587
    %1589 = vdwg.mxu0
    %v1590 = vxor.u32 %v1586, 2147483648
    %v1591 = vxor.u32 %v1588, 2147483648
    %v1592 = vmul.f32 %v1590, 1.442695
    %v1593 = vpow.pop %v1592
    %v1594 = vmul.f32 %v1591, 1.442695
    %v1595 = vpow.pop %v1594
    %v1596 = vadd.f32 %v1593, 1.0
    %v1597 = vadd.f32 %v1595, 1.0
    %v1598 = vrcp.pop %v1596
    %v1599 = vmul.f32 1.0, %v1598
    %v1600 = vrcp.pop %v1597
    %v1601 = vmul.f32 1.0, %v1600
    %v1602 = vtanh.pop %v1588
    %v1603 = vmul.f32 %v1599, %v1500
    %v1604 = vmul.f32 %v1599, %v1602
    %1606 = vrot.lane.b32.xlu0 %v1604, 64
    %v1607 = vpop.permute.xlu0 %1606
    %v1609 = vadd.f32 %v1603, %v1607
    %v1610 = vtanh.pop %v1609
    %v1611 = vmul.f32 %v1601, %v1610
    %1612 = vst.msk [vmem:[%s8 + $0x2] sm:$0x3] %vm1171, %v1611
    %1614 = vst.msk [vmem:[#allocation13] sm:$0x3] %vm844, %v1516
    %1616 = vrot.lane.b32.xlu0 %v1611, 32
    %v1617 = vpop.permute.xlu0 %1616
    %s1619 = scalar_lea.vmem [#allocation13], 2
    %1620 = vst.msk [vmem:[%s1619] sm:$0x3] %vm844, %v1617
    %1622 = vrot.lane.b32.xlu0 %v1500, 64
    %v1623 = vpop.permute.xlu0 %1622
    %1625 = vst.msk [vmem:[#allocation14] sm:$0x3] %vm844, %v1623
    %1627 = vrot.lane.b32.xlu0 %v1609, 32
    %v1628 = vpop.permute.xlu0 %1627
    %s1630 = scalar_lea.vmem [#allocation14], 2
    %1631 = vst.msk [vmem:[%s1630] sm:$0x3] %vm844, %v1628
    // Predicated region
    $region58: #{encoder_forward.1} parent=1 // pred_check
      _
    $region59: #{encoder_forward.1} parent=1 // pred_check_branch
      %1633 = sbr.rel (0) target = $region61
    $region60: #{encoder_forward.1} parent=1 // pred_region
      _
    $region61: #{encoder_forward.1} parent=1 // pred_fallthru
      _
    // Predicated region
    $region62: #{encoder_forward.1} parent=1 // pred_check
      _
    $region63: #{encoder_forward.1} parent=1 // pred_check_branch
      %1635 = sbr.rel (0) target = $region65
    $region64: #{encoder_forward.1} parent=1 // pred_region
      %s1637 = ssub.s32 64, 64
      %1638 = vsyncadd [#allocation4], %s1637
      %s1639 = sshll.u32 [#allocation13], 4
      %s1640 = int_to_ptr.vmem [resolvable:$true] %s1639
      %1645 = dma.vmem_to_hbm [thread:$0]  %s1640, 64, %s9, [#allocation4], 32, 32, 2
    $region65: #{encoder_forward.1} parent=1 // pred_fallthru
      _
    // Predicated region
    $region66: #{encoder_forward.1} parent=1 // pred_check
      _
    $region67: #{encoder_forward.1} parent=1 // pred_check_branch
      %1647 = sbr.rel (0) target = $region69
    $region68: #{encoder_forward.1} parent=1 // pred_region
      %s1649 = ssub.s32 64, 64
      %1650 = vsyncadd [#allocation15], %s1649
      %s1651 = sshll.u32 [#allocation14], 4
      %s1652 = int_to_ptr.vmem [resolvable:$true] %s1651
      %1657 = dma.vmem_to_hbm [thread:$0]  %s1652, 64, %s10, [#allocation15], 32, 32, 2
    $region69: #{encoder_forward.1} parent=1 // pred_fallthru
      _
    // Predicated region
    $region70: #{encoder_forward.1} parent=1 // pred_check
      _
    $region71: #{encoder_forward.1} parent=1 // pred_check_branch
      %1659 = sbr.rel (0) target = $region73
    $region72: #{encoder_forward.1} parent=1 // pred_region
      _
    $region73: #{encoder_forward.1} parent=1 // pred_fallthru
      _
    // Predicated region
    $region74: #{encoder_forward.1} parent=1 // pred_check
      _
    $region75: #{encoder_forward.1} parent=1 // pred_check_branch
      %1661 = sbr.rel (0) target = $region77
    $region76: #{encoder_forward.1} parent=1 // pred_region
      %1662 = dma.done [#allocation4], 64
    $region77: #{encoder_forward.1} parent=1 // pred_fallthru
      _
    // Predicated region
    $region78: #{encoder_forward.1} parent=1 // pred_check
      _
    $region79: #{encoder_forward.1} parent=1 // pred_check_branch
      %1664 = sbr.rel (0) target = $region81
    $region80: #{encoder_forward.1} parent=1 // pred_region
      %1665 = dma.done [#allocation15], 64
    $region81: #{encoder_forward.1} parent=1 // pred_fallthru
      _
    %1666 = vsyncpa [#allocation3], 1
    %1667 = vsyncpa [#allocation6], 1
    %1668 = vsyncpa [#allocation9], 1
    %1669 = vsyncpa [#allocation12], 1
    %1670 = vsyncpa [#allocation4], 1
    %1671 = vsyncpa [#allocation15], 1

</llo_original>
